<compile_context>
chip_gen: v6e
topology: v6e:2x2x1
jax: 0.10.0
libtpu: 0.0.40
codegen_flags: <defaults>
</compile_context>

<pallas_src>
import functools
import math

import jax
import jax.numpy as jnp
from jax.experimental import pallas as pl
from jax.experimental.pallas import tpu as pltpu

# ---------------- small-but-faithful config ----------------
VOCAB = 128
MAX_POS = 16
TYPE_VOCAB = 2
HIDDEN = 32
N_HEADS = 4
HEAD_DIM = HIDDEN // N_HEADS
INTERMEDIATE = 4 * HIDDEN
N_LAYERS = 2
NUM_LABELS = 8
LOGIT_LANES = 128          # lane-dense padded classifier width
LN_EPS = 1e-12
NUM_DROPOUTS = 5           # len(self.dropouts) in the torch module (p = 0.5)


# ---------------- in-kernel helpers ----------------
def _layer_norm(x, g, b, eps=LN_EPS):
    mu = jnp.mean(x, axis=-1, keepdims=True)
    var = jnp.mean((x - mu) ** 2, axis=-1, keepdims=True)
    return (x - mu) * jax.lax.rsqrt(var + eps) * g + b


# ---------------- the fused Pallas kernel (one sequence per grid step) ----------------
def fused_bert_kernel(emb_ref, amask_ref, hsel_ref, ln0g_ref, ln0b_ref,
                      wqkv_ref, bqkv_ref, wo_ref, bo_ref, ln1g_ref, ln1b_ref,
                      w1_ref, b1_ref, w2_ref, b2_ref, ln2g_ref, ln2b_ref,
                      clsw_ref, clsb_ref, *rest,
                      nh, hd, n_layers, training, have_labels):
    # variable tail: [labels, loss_mask]? [seed]? logits [nll, cnt]?
    i = 0
    if have_labels:
        lab_ref, lmsk_ref = rest[0], rest[1]
        i = 2
    if training:
        seed_ref = rest[i]
        i += 1
    logits_ref = rest[i]
    i += 1
    if have_labels:
        nll_ref, cnt_ref = rest[i], rest[i + 1]

    H = nh * hd
    bf16 = jnp.bfloat16

    # ---- embeddings LayerNorm ----
    x = _layer_norm(emb_ref[0], ln0g_ref[...], ln0b_ref[...])        # [S, H] f32
    S = x.shape[0]

    # hoisted out of the layer loop (pre-tiled wrapper-side)
    amask = amask_ref[0]                                             # [nh*S, S]
    hsel = hsel_ref[...]                                             # [nh*S, H] 0/1 head mask

    # ---- encoder layers (static unrolled, weights VMEM-resident) ----
    for l in range(n_layers):
        # fused QKV projection (1 MXU push); softmax scale pre-folded into Wq/bq
        qkv = (jnp.dot(x.astype(bf16), wqkv_ref[l],
                       preferred_element_type=jnp.float32) + bqkv_ref[l])    # [S, 3H]
        q = qkv[:, 0:H]
        k = qkv[:, H:2 * H]
        v = qkv[:, 2 * H:3 * H]

        # All heads in ONE QK^T push: tile queries along sublanes, select each
        # head's columns with the 0/1 mask -> block-diagonal head structure,
        # no hd-wide lane slicing anywhere.
        q_rep = jnp.concatenate([q] * nh, axis=0) * hsel             # [nh*S, H]
        s = jax.lax.dot_general(q_rep.astype(bf16), k.astype(bf16),
                                (((1,), (1,)), ((), ())),
                                preferred_element_type=jnp.float32)  # [nh*S, S]
        s = s + amask
        s = s - jnp.max(s, axis=-1, keepdims=True)
        p = jnp.exp(s)
        p = p * pl.reciprocal(jnp.sum(p, axis=-1, keepdims=True), approx=True)

        # All-head PV in ONE push; keep each head's own columns, then collapse
        # the sublane head blocks with aligned slices + VPU adds.
        ctx_all = jnp.dot(p.astype(bf16), v.astype(bf16),
                          preferred_element_type=jnp.float32) * hsel  # [nh*S, H]
        ctx = ctx_all[0:S, :]
        for h in range(1, nh):
            ctx = ctx + ctx_all[h * S:(h + 1) * S, :]                 # [S, H]

        attn_out = (jnp.dot(ctx.astype(bf16), wo_ref[l],
                            preferred_element_type=jnp.float32) + bo_ref[l])
        x1 = _layer_norm(x + attn_out, ln1g_ref[l], ln1b_ref[l])

        # TODO(synk): HF BERT uses exact erf-GELU; tanh-approx GELU used for TPU lowering.
        h1 = jax.nn.gelu(jnp.dot(x1.astype(bf16), w1_ref[l],
                                 preferred_element_type=jnp.float32) + b1_ref[l])
        ffn = jnp.dot(h1.astype(bf16), w2_ref[l],
                      preferred_element_type=jnp.float32) + b2_ref[l]
        x = _layer_norm(x1 + ffn, ln2g_ref[l], ln2b_ref[l])

    # ---- multi-sample-dropout classifier head, collapsed to ONE matmul ----
    if training:
        # TODO(synk): train-mode BERT encoder attention/hidden dropouts are not modeled.
        pltpu.prng_seed(seed_ref[0] + pl.program_id(0))
        keep_sum = jnp.zeros(x.shape, jnp.float32)
        for _ in range(NUM_DROPOUTS):
            bits = pltpu.prng_random_bits(x.shape)
            keep_sum = keep_sum + (pltpu.bitcast(bits, jnp.int32) >= 0).astype(jnp.float32)
        # linearity: mean_i((2*keep_i*x) @ W) == (x * (2/n) * sum_i keep_i) @ W   (p = 0.5)
        x_eff = x * (keep_sum * (2.0 / NUM_DROPOUTS))
    else:
        x_eff = x                     # eval: dropout is identity -> single pass
    logits = (jnp.dot(x_eff.astype(bf16), clsw_ref[...],
                      preferred_element_type=jnp.float32) + clsb_ref[...])   # [S, 128]
    logits_ref[0] = logits            # lane-dense (128-wide) unmasked store

    # ---- attention-masked CrossEntropy partial sums (mean finished in wrapper) ----
    if have_labels:
        lab = lab_ref[0]                                             # [S, 1] int32
        active = (lmsk_ref[0] == 1).astype(jnp.float32)              # [S, 1]
        # padded logit columns carry bias -1e9 -> exp underflows to 0, LSE exact
        m = jnp.max(logits, axis=-1, keepdims=True)
        lse = m + jnp.log(jnp.sum(jnp.exp(logits - m), axis=-1, keepdims=True))
        iota = jax.lax.broadcasted_iota(jnp.int32, logits.shape, 1)
        picked = jnp.sum(jnp.where(iota == lab, logits, 0.0), axis=-1, keepdims=True)
        nll = (lse - picked) * active                                # [S, 1]
        nll_ref[...] = jnp.sum(nll, axis=0, keepdims=True).reshape(1, 1, 1)
        cnt_ref[...] = jnp.sum(active, axis=0, keepdims=True).reshape(1, 1, 1)


# ---------------- pallas_call wrapper ----------------
def fused_forward_pallas(params, emb, add_mask, head_sel, labels3d, loss_mask3d,
                         seed, training, have_labels):
    B, S, H = emb.shape

    def _resident(a):
        # full-array block, constant block index -> stays VMEM-resident across grid steps
        nd = a.ndim
        return pl.BlockSpec(a.shape, lambda b, _nd=nd: (0,) * _nd)

    weight_args = [
        head_sel,
        params["emb_ln_g"], params["emb_ln_b"],
        params["wqkv"], params["bqkv"], params["wo"], params["bo"],
        params["ln1_g"], params["ln1_b"], params["w1"], params["b1"],
        params["w2"], params["b2"], params["ln2_g"], params["ln2_b"],
        params["cls_w"], params["cls_b"],
    ]
    args = [emb, add_mask] + weight_args
    in_specs = [
        pl.BlockSpec((1, S, H), lambda b: (b, 0, 0)),
        pl.BlockSpec((1, N_HEADS * S, S), lambda b: (b, 0, 0)),
    ] + [_resident(a) for a in weight_args]

    if have_labels:
        args += [labels3d, loss_mask3d]
        in_specs += [pl.BlockSpec((1, S, 1), lambda b: (b, 0, 0)),
                     pl.BlockSpec((1, S, 1), lambda b: (b, 0, 0))]
    if training:
        args += [seed]
        in_specs += [pl.BlockSpec(memory_space=pltpu.MemorySpace.SMEM)]

    out_shape = [jax.ShapeDtypeStruct((B, S, LOGIT_LANES), jnp.float32)]
    out_specs = [pl.BlockSpec((1, S, LOGIT_LANES), lambda b: (b, 0, 0))]
    if have_labels:
        out_shape += [jax.ShapeDtypeStruct((B, 1, 1), jnp.float32),
                      jax.ShapeDtypeStruct((B, 1, 1), jnp.float32)]
        out_specs += [pl.BlockSpec((1, 1, 1), lambda b: (b, 0, 0)),
                      pl.BlockSpec((1, 1, 1), lambda b: (b, 0, 0))]

    kernel = functools.partial(fused_bert_kernel, nh=N_HEADS, hd=HEAD_DIM,
                               n_layers=N_LAYERS, training=training,
                               have_labels=have_labels)

    results = pl.pallas_call(
        kernel,
        grid_spec=pltpu.PrefetchScalarGridSpec(
            num_scalar_prefetch=0,
            grid=(B,),
            in_specs=in_specs,
            out_specs=tuple(out_specs)),
        out_shape=tuple(out_shape),
        compiler_params=pltpu.CompilerParams(
            dimension_semantics=("parallel",)),
    )(*args)
    return results


# ---------------- parameters (deterministic synthetic init) ----------------
def init_params(key):
    ks = jax.random.split(key, 8)
    L = N_LAYERS

    def nrm(k, shape):
        return (0.02 * jax.random.normal(k, shape)).astype(jnp.float32)

    return {
        "word_emb": nrm(ks[0], (VOCAB, HIDDEN)),
        "pos_emb": nrm(ks[1], (MAX_POS, HIDDEN)),
        "type_emb": nrm(ks[2], (TYPE_VOCAB, HIDDEN)),
        "emb_ln_g": jnp.ones((1, HIDDEN), jnp.float32),
        "emb_ln_b": jnp.zeros((1, HIDDEN), jnp.float32),
        "cls_w": nrm(ks[3], (HIDDEN, NUM_LABELS)),
        "cls_b": jnp.zeros((1, NUM_LABELS), jnp.float32),
        # per-layer weights stacked on a leading layer axis; QKV fused [H, 3H]
        "wqkv": nrm(ks[4], (L, HIDDEN, 3 * HIDDEN)),
        "bqkv": jnp.zeros((L, 1, 3 * HIDDEN), jnp.float32),
        "wo": nrm(ks[5], (L, HIDDEN, HIDDEN)),
        "bo": jnp.zeros((L, 1, HIDDEN), jnp.float32),
        "ln1_g": jnp.ones((L, 1, HIDDEN), jnp.float32),
        "ln1_b": jnp.zeros((L, 1, HIDDEN), jnp.float32),
        "w1": nrm(ks[6], (L, HIDDEN, INTERMEDIATE)),
        "b1": jnp.zeros((L, 1, INTERMEDIATE), jnp.float32),
        "w2": nrm(ks[7], (L, INTERMEDIATE, HIDDEN)),
        "b2": jnp.zeros((L, 1, HIDDEN), jnp.float32),
        "ln2_g": jnp.ones((L, 1, HIDDEN), jnp.float32),
        "ln2_b": jnp.zeros((L, 1, HIDDEN), jnp.float32),
    }


def prepare_params(raw):
    """One-time host-side prep: fold softmax scale into Wq/bq, pad classifier to a
    lane-dense 128-wide slab, and narrow MXU-weight operands to bf16 (biases /
    LayerNorm params stay f32 so all elementwise math stays f32)."""
    p = dict(raw)
    scale = 1.0 / math.sqrt(HEAD_DIM)
    wqkv = raw["wqkv"].at[:, :, :HIDDEN].multiply(scale)
    bqkv = raw["bqkv"].at[:, :, :HIDDEN].multiply(scale)
    cls_w = jnp.zeros((HIDDEN, LOGIT_LANES), jnp.float32).at[:, :NUM_LABELS].set(raw["cls_w"])
    cls_b = jnp.full((1, LOGIT_LANES), -1e9, jnp.float32).at[:, :NUM_LABELS].set(raw["cls_b"])
    p.update(
        wqkv=wqkv.astype(jnp.bfloat16),
        bqkv=bqkv,
        wo=raw["wo"].astype(jnp.bfloat16),
        w1=raw["w1"].astype(jnp.bfloat16),
        w2=raw["w2"].astype(jnp.bfloat16),
        cls_w=cls_w.astype(jnp.bfloat16),
        cls_b=cls_b,
    )
    return p


# ---------------- full forward (mirrors BertPropaganda.forward) ----------------
def bert_propaganda_forward(params, input_ids, attention_mask=None,
                            token_type_ids=None, position_ids=None, labels=None,
                            training=False, dropout_seed=0):
    B, S = input_ids.shape
    if attention_mask is None:
        attention_mask = jnp.ones((B, S), jnp.int32)
    if token_type_ids is None:
        token_type_ids = jnp.zeros((B, S), jnp.int32)
    if position_ids is None:
        position_ids = jnp.arange(S, dtype=jnp.int32)

    # embeddings: gathers are glue, everything after runs in the fused Pallas kernel
    we = jnp.take(params["word_emb"], input_ids, axis=0)
    pe = jnp.take(params["pos_emb"], position_ids, axis=0)[None, :, :]
    te = jnp.take(params["type_emb"], token_type_ids, axis=0)
    emb = (we + pe + te).astype(jnp.float32)                         # [B, S, H]

    # per-sequence key-padding additive mask, pre-tiled to all heads: [B, nh*S, S]
    add = jnp.where(attention_mask == 1, 0.0, -10000.0).astype(jnp.float32)   # [B, S]
    add_mask = jnp.broadcast_to(add[:, None, :], (B, N_HEADS * S, S))

    # 0/1 head-selection mask: row h*S+n selects the columns of head h  -> [nh*S, H]
    row_head = jax.lax.broadcasted_iota(jnp.int32, (N_HEADS * S, HIDDEN), 0) // S
    col_head = jax.lax.broadcasted_iota(jnp.int32, (N_HEADS * S, HIDDEN), 1) // HEAD_DIM
    head_sel = (row_head == col_head).astype(jnp.float32)

    have_labels = labels is not None
    labels3d = (labels.reshape(B, S, 1).astype(jnp.int32) if have_labels
                else jnp.zeros((B, S, 1), jnp.int32))
    loss_mask3d = attention_mask.reshape(B, S, 1).astype(jnp.int32)
    seed = jnp.asarray([dropout_seed], jnp.int32)

    results = fused_forward_pallas(params, emb, add_mask, head_sel, labels3d,
                                   loss_mask3d, seed, training, have_labels)

    logits = results[0][:, :, :NUM_LABELS]                           # strip lane padding

    outputs = (logits,)                                              # outputs[2:] empty
    if have_labels:
        total = jnp.sum(results[1])
        count = jnp.sum(results[2])
        loss = total / jnp.maximum(count, 1.0)                       # guard all-padding batch
        outputs = (loss,) + outputs
    return outputs


if __name__ == "__main__":
    key = jax.random.PRNGKey(0)
    pkey, ikey, lkey = jax.random.split(key, 3)
    params = prepare_params(init_params(pkey))

    B, S = 2, 8
    input_ids = jax.random.randint(ikey, (B, S), 0, VOCAB, dtype=jnp.int32)
    attention_mask = jnp.array([[1, 1, 1, 1, 1, 1, 1, 1],
                                [1, 1, 1, 1, 1, 1, 0, 0]], jnp.int32)
    labels = jax.random.randint(lkey, (B, S), 0, NUM_LABELS, dtype=jnp.int32)

    loss, logits = bert_propaganda_forward(params, input_ids,
                                           attention_mask=attention_mask,
                                           labels=labels, training=False)
    loss = jax.block_until_ready(loss)
    logits = jax.block_until_ready(logits)

    assert logits.shape == (B, S, NUM_LABELS), logits.shape
    assert bool(jnp.isfinite(loss)), loss
    print("KERNEL_OK")
</pallas_src>

<mosaic_0001>
module attributes {stable_mosaic.version = 11 : i64} {
  func.func @fused_bert_kernel(%arg0: i32, %arg1: memref<1x8x32xf32, #tpu.memory_space<vmem>>, %arg2: memref<1x32x8xf32, #tpu.memory_space<vmem>>, %arg3: memref<32x32xf32, #tpu.memory_space<vmem>>, %arg4: memref<1x32xf32, #tpu.memory_space<vmem>>, %arg5: memref<1x32xf32, #tpu.memory_space<vmem>>, %arg6: memref<2x32x96xbf16, #tpu.memory_space<vmem>>, %arg7: memref<2x1x96xf32, #tpu.memory_space<vmem>>, %arg8: memref<2x32x32xbf16, #tpu.memory_space<vmem>>, %arg9: memref<2x1x32xf32, #tpu.memory_space<vmem>>, %arg10: memref<2x1x32xf32, #tpu.memory_space<vmem>>, %arg11: memref<2x1x32xf32, #tpu.memory_space<vmem>>, %arg12: memref<2x32x128xbf16, #tpu.memory_space<vmem>>, %arg13: memref<2x1x128xf32, #tpu.memory_space<vmem>>, %arg14: memref<2x128x32xbf16, #tpu.memory_space<vmem>>, %arg15: memref<2x1x32xf32, #tpu.memory_space<vmem>>, %arg16: memref<2x1x32xf32, #tpu.memory_space<vmem>>, %arg17: memref<2x1x32xf32, #tpu.memory_space<vmem>>, %arg18: memref<32x128xbf16, #tpu.memory_space<vmem>>, %arg19: memref<1x128xf32, #tpu.memory_space<vmem>>, %arg20: memref<1x8x1xi32, #tpu.memory_space<vmem>>, %arg21: memref<1x8x1xi32, #tpu.memory_space<vmem>>, %arg22: memref<1x8x128xf32, #tpu.memory_space<vmem>>, %arg23: memref<1x1x1xf32, #tpu.memory_space<vmem>>, %arg24: memref<1x1x1xf32, #tpu.memory_space<vmem>>) attributes {dimension_semantics = [#tpu.dimension_semantics<parallel>], iteration_bounds = array<i64: 2>, scalar_prefetch = 0 : i64, scratch_operands = 0 : i64, tpu.core_type = #tpu.core_type<tc>, window_params = [{transform_indices = @transform_0, window_bounds = array<i64: 1, 8, 32>}, {transform_indices = @transform_1, window_bounds = array<i64: 1, 32, 8>}, {pipeline_mode = #tpu.pipeline_mode<synchronous>, transform_indices = @transform_2, window_bounds = array<i64: 32, 32>}, {pipeline_mode = #tpu.pipeline_mode<synchronous>, transform_indices = @transform_3, window_bounds = array<i64: 1, 32>}, {pipeline_mode = #tpu.pipeline_mode<synchronous>, transform_indices = @transform_4, window_bounds = array<i64: 1, 32>}, {pipeline_mode = #tpu.pipeline_mode<synchronous>, transform_indices = @transform_5, window_bounds = array<i64: 2, 32, 96>}, {pipeline_mode = #tpu.pipeline_mode<synchronous>, transform_indices = @transform_6, window_bounds = array<i64: 2, 1, 96>}, {pipeline_mode = #tpu.pipeline_mode<synchronous>, transform_indices = @transform_7, window_bounds = array<i64: 2, 32, 32>}, {pipeline_mode = #tpu.pipeline_mode<synchronous>, transform_indices = @transform_8, window_bounds = array<i64: 2, 1, 32>}, {pipeline_mode = #tpu.pipeline_mode<synchronous>, transform_indices = @transform_9, window_bounds = array<i64: 2, 1, 32>}, {pipeline_mode = #tpu.pipeline_mode<synchronous>, transform_indices = @transform_10, window_bounds = array<i64: 2, 1, 32>}, {pipeline_mode = #tpu.pipeline_mode<synchronous>, transform_indices = @transform_11, window_bounds = array<i64: 2, 32, 128>}, {pipeline_mode = #tpu.pipeline_mode<synchronous>, transform_indices = @transform_12, window_bounds = array<i64: 2, 1, 128>}, {pipeline_mode = #tpu.pipeline_mode<synchronous>, transform_indices = @transform_13, window_bounds = array<i64: 2, 128, 32>}, {pipeline_mode = #tpu.pipeline_mode<synchronous>, transform_indices = @transform_14, window_bounds = array<i64: 2, 1, 32>}, {pipeline_mode = #tpu.pipeline_mode<synchronous>, transform_indices = @transform_15, window_bounds = array<i64: 2, 1, 32>}, {pipeline_mode = #tpu.pipeline_mode<synchronous>, transform_indices = @transform_16, window_bounds = array<i64: 2, 1, 32>}, {pipeline_mode = #tpu.pipeline_mode<synchronous>, transform_indices = @transform_17, window_bounds = array<i64: 32, 128>}, {pipeline_mode = #tpu.pipeline_mode<synchronous>, transform_indices = @transform_18, window_bounds = array<i64: 1, 128>}, {transform_indices = @transform_19, window_bounds = array<i64: 1, 8, 1>}, {transform_indices = @transform_20, window_bounds = array<i64: 1, 8, 1>}, {transform_indices = @transform_21, window_bounds = array<i64: 1, 8, 128>}, {transform_indices = @transform_22, window_bounds = array<i64: 1, 1, 1>}, {transform_indices = @transform_23, window_bounds = array<i64: 1, 1, 1>}]} {
    %c0 = arith.constant 0 : index
    %c0_0 = arith.constant 0 : index
    %c0_1 = arith.constant 0 : index
    %0 = vector.load %arg1[%c0, %c0_0, %c0_1] : memref<1x8x32xf32, #tpu.memory_space<vmem>>, vector<1x8x32xf32>
    %1 = vector.shape_cast %0 : vector<1x8x32xf32> to vector<8x32xf32>
    %c0_2 = arith.constant 0 : index
    %c0_3 = arith.constant 0 : index
    %2 = vector.load %arg4[%c0_2, %c0_3] : memref<1x32xf32, #tpu.memory_space<vmem>>, vector<1x32xf32>
    %c0_4 = arith.constant 0 : index
    %c0_5 = arith.constant 0 : index
    %3 = vector.load %arg5[%c0_4, %c0_5] : memref<1x32xf32, #tpu.memory_space<vmem>>, vector<1x32xf32>
    %cst = arith.constant dense<0.000000e+00> : vector<8xf32>
    %4 = vector.multi_reduction <add>, %1, %cst [1] : vector<8x32xf32> to vector<8xf32>
    %5 = vector.shape_cast %4 : vector<8xf32> to vector<8x1xf32>
    %cst_6 = arith.constant 3.200000e+01 : f32
    %6 = vector.broadcast %cst_6 : f32 to vector<8x1xf32>
    %7 = arith.divf %5, %6 : vector<8x1xf32>
    %8 = vector.broadcast %7 : vector<8x1xf32> to vector<8x32xf32>
    %9 = arith.subf %1, %8 : vector<8x32xf32>
    %10 = arith.mulf %9, %9 : vector<8x32xf32>
    %cst_7 = arith.constant dense<0.000000e+00> : vector<8xf32>
    %11 = vector.multi_reduction <add>, %10, %cst_7 [1] : vector<8x32xf32> to vector<8xf32>
    %12 = vector.shape_cast %11 : vector<8xf32> to vector<8x1xf32>
    %cst_8 = arith.constant 3.200000e+01 : f32
    %13 = vector.broadcast %cst_8 : f32 to vector<8x1xf32>
    %14 = arith.divf %12, %13 : vector<8x1xf32>
    %15 = vector.broadcast %7 : vector<8x1xf32> to vector<8x32xf32>
    %16 = arith.subf %1, %15 : vector<8x32xf32>
    %cst_9 = arith.constant 9.99999996E-13 : f32
    %17 = vector.broadcast %cst_9 : f32 to vector<8x1xf32>
    %18 = arith.addf %14, %17 : vector<8x1xf32>
    %19 = math.rsqrt %18 : vector<8x1xf32>
    %20 = vector.broadcast %19 : vector<8x1xf32> to vector<8x32xf32>
    %21 = arith.mulf %16, %20 : vector<8x32xf32>
    %22 = vector.broadcast %2 : vector<1x32xf32> to vector<8x32xf32>
    %23 = arith.mulf %21, %22 : vector<8x32xf32>
    %24 = vector.broadcast %3 : vector<1x32xf32> to vector<8x32xf32>
    %25 = arith.addf %23, %24 : vector<8x32xf32>
    %c0_10 = arith.constant 0 : index
    %c0_11 = arith.constant 0 : index
    %c0_12 = arith.constant 0 : index
    %26 = vector.load %arg2[%c0_10, %c0_11, %c0_12] : memref<1x32x8xf32, #tpu.memory_space<vmem>>, vector<1x32x8xf32>
    %27 = vector.shape_cast %26 : vector<1x32x8xf32> to vector<32x8xf32>
    %c0_13 = arith.constant 0 : index
    %c0_14 = arith.constant 0 : index
    %28 = vector.load %arg3[%c0_13, %c0_14] : memref<32x32xf32, #tpu.memory_space<vmem>>, vector<32x32xf32>
    %29 = arith.truncf %25 : vector<8x32xf32> to vector<8x32xbf16>
    %c0_15 = arith.constant 0 : index
    %c0_16 = arith.constant 0 : index
    %c0_17 = arith.constant 0 : index
    %30 = vector.load %arg6[%c0_15, %c0_16, %c0_17] : memref<2x32x96xbf16, #tpu.memory_space<vmem>>, vector<1x32x96xbf16>
    %31 = vector.shape_cast %30 : vector<1x32x96xbf16> to vector<32x96xbf16>
    %cst_18 = arith.constant dense<0.000000e+00> : vector<8x96xf32>
    %32 = tpu.matmul %29, %31, %cst_18 {dimension_numbers = #tpu.dot_dimension_numbers<[1], [0], [0], [1], [0, 0, 1, 1], [], []>} : vector<8x32xbf16>, vector<32x96xbf16>, vector<8x96xf32> -> vector<8x96xf32>
    %c0_19 = arith.constant 0 : index
    %c0_20 = arith.constant 0 : index
    %c0_21 = arith.constant 0 : index
    %33 = vector.load %arg7[%c0_19, %c0_20, %c0_21] : memref<2x1x96xf32, #tpu.memory_space<vmem>>, vector<1x1x96xf32>
    %34 = vector.shape_cast %33 : vector<1x1x96xf32> to vector<1x96xf32>
    %35 = vector.broadcast %34 : vector<1x96xf32> to vector<8x96xf32>
    %36 = arith.addf %32, %35 : vector<8x96xf32>
    %37 = vector.extract_strided_slice %36 {offsets = [0, 0], sizes = [8, 32], strides = [1, 1]} : vector<8x96xf32> to vector<8x32xf32>
    %38 = vector.extract_strided_slice %36 {offsets = [0, 32], sizes = [8, 32], strides = [1, 1]} : vector<8x96xf32> to vector<8x32xf32>
    %39 = vector.extract_strided_slice %36 {offsets = [0, 64], sizes = [8, 32], strides = [1, 1]} : vector<8x96xf32> to vector<8x32xf32>
    %40 = tpu.concatenate %37, %37, %37, %37 in 0 : vector<8x32xf32>, vector<8x32xf32>, vector<8x32xf32>, vector<8x32xf32> -> vector<32x32xf32>
    %41 = arith.mulf %40, %28 : vector<32x32xf32>
    %42 = arith.truncf %41 : vector<32x32xf32> to vector<32x32xbf16>
    %43 = arith.truncf %38 : vector<8x32xf32> to vector<8x32xbf16>
    %cst_22 = arith.constant dense<0.000000e+00> : vector<32x8xf32>
    %44 = tpu.matmul %42, %43, %cst_22 {dimension_numbers = #tpu.dot_dimension_numbers<[1], [1], [0], [0], [0, 0, 1, 0], [], []>} : vector<32x32xbf16>, vector<8x32xbf16>, vector<32x8xf32> -> vector<32x8xf32>
    %45 = arith.addf %44, %27 : vector<32x8xf32>
    %cst_23 = arith.constant dense<0xFF800000> : vector<32xf32>
    %46 = vector.multi_reduction <maximumf>, %45, %cst_23 [1] : vector<32x8xf32> to vector<32xf32>
    %47 = vector.shape_cast %46 : vector<32xf32> to vector<32x1xf32>
    %48 = vector.broadcast %47 : vector<32x1xf32> to vector<32x8xf32>
    %49 = arith.subf %45, %48 : vector<32x8xf32>
    %50 = math.exp %49 : vector<32x8xf32>
    %cst_24 = arith.constant dense<0.000000e+00> : vector<32xf32>
    %51 = vector.multi_reduction <add>, %50, %cst_24 [1] : vector<32x8xf32> to vector<32xf32>
    %52 = vector.shape_cast %51 : vector<32xf32> to vector<32x1xf32>
    %53 = tpu.reciprocal %52 {approx = true} : vector<32x1xf32> -> vector<32x1xf32>
    %54 = vector.broadcast %53 : vector<32x1xf32> to vector<32x8xf32>
    %55 = arith.mulf %50, %54 : vector<32x8xf32>
    %56 = arith.truncf %55 : vector<32x8xf32> to vector<32x8xbf16>
    %57 = arith.truncf %39 : vector<8x32xf32> to vector<8x32xbf16>
    %cst_25 = arith.constant dense<0.000000e+00> : vector<32x32xf32>
    %58 = tpu.matmul %56, %57, %cst_25 {dimension_numbers = #tpu.dot_dimension_numbers<[1], [0], [0], [1], [0, 0, 1, 1], [], []>} : vector<32x8xbf16>, vector<8x32xbf16>, vector<32x32xf32> -> vector<32x32xf32>
    %59 = arith.mulf %58, %28 : vector<32x32xf32>
    %60 = vector.extract_strided_slice %59 {offsets = [0, 0], sizes = [8, 32], strides = [1, 1]} : vector<32x32xf32> to vector<8x32xf32>
    %61 = vector.extract_strided_slice %59 {offsets = [8, 0], sizes = [8, 32], strides = [1, 1]} : vector<32x32xf32> to vector<8x32xf32>
    %62 = arith.addf %60, %61 : vector<8x32xf32>
    %63 = vector.extract_strided_slice %59 {offsets = [16, 0], sizes = [8, 32], strides = [1, 1]} : vector<32x32xf32> to vector<8x32xf32>
    %64 = arith.addf %62, %63 : vector<8x32xf32>
    %65 = vector.extract_strided_slice %59 {offsets = [24, 0], sizes = [8, 32], strides = [1, 1]} : vector<32x32xf32> to vector<8x32xf32>
    %66 = arith.addf %64, %65 : vector<8x32xf32>
    %67 = arith.truncf %66 : vector<8x32xf32> to vector<8x32xbf16>
    %c0_26 = arith.constant 0 : index
    %c0_27 = arith.constant 0 : index
    %c0_28 = arith.constant 0 : index
    %68 = vector.load %arg8[%c0_26, %c0_27, %c0_28] : memref<2x32x32xbf16, #tpu.memory_space<vmem>>, vector<1x32x32xbf16>
    %69 = vector.shape_cast %68 : vector<1x32x32xbf16> to vector<32x32xbf16>
    %cst_29 = arith.constant dense<0.000000e+00> : vector<8x32xf32>
    %70 = tpu.matmul %67, %69, %cst_29 {dimension_numbers = #tpu.dot_dimension_numbers<[1], [0], [0], [1], [0, 0, 1, 1], [], []>} : vector<8x32xbf16>, vector<32x32xbf16>, vector<8x32xf32> -> vector<8x32xf32>
    %c0_30 = arith.constant 0 : index
    %c0_31 = arith.constant 0 : index
    %c0_32 = arith.constant 0 : index
    %71 = vector.load %arg9[%c0_30, %c0_31, %c0_32] : memref<2x1x32xf32, #tpu.memory_space<vmem>>, vector<1x1x32xf32>
    %72 = vector.shape_cast %71 : vector<1x1x32xf32> to vector<1x32xf32>
    %73 = vector.broadcast %72 : vector<1x32xf32> to vector<8x32xf32>
    %74 = arith.addf %70, %73 : vector<8x32xf32>
    %75 = arith.addf %25, %74 : vector<8x32xf32>
    %c0_33 = arith.constant 0 : index
    %c0_34 = arith.constant 0 : index
    %c0_35 = arith.constant 0 : index
    %76 = vector.load %arg10[%c0_33, %c0_34, %c0_35] : memref<2x1x32xf32, #tpu.memory_space<vmem>>, vector<1x1x32xf32>
    %77 = vector.shape_cast %76 : vector<1x1x32xf32> to vector<1x32xf32>
    %c0_36 = arith.constant 0 : index
    %c0_37 = arith.constant 0 : index
    %c0_38 = arith.constant 0 : index
    %78 = vector.load %arg11[%c0_36, %c0_37, %c0_38] : memref<2x1x32xf32, #tpu.memory_space<vmem>>, vector<1x1x32xf32>
    %79 = vector.shape_cast %78 : vector<1x1x32xf32> to vector<1x32xf32>
    %cst_39 = arith.constant dense<0.000000e+00> : vector<8xf32>
    %80 = vector.multi_reduction <add>, %75, %cst_39 [1] : vector<8x32xf32> to vector<8xf32>
    %81 = vector.shape_cast %80 : vector<8xf32> to vector<8x1xf32>
    %cst_40 = arith.constant 3.200000e+01 : f32
    %82 = vector.broadcast %cst_40 : f32 to vector<8x1xf32>
    %83 = arith.divf %81, %82 : vector<8x1xf32>
    %84 = vector.broadcast %83 : vector<8x1xf32> to vector<8x32xf32>
    %85 = arith.subf %75, %84 : vector<8x32xf32>
    %86 = arith.mulf %85, %85 : vector<8x32xf32>
    %cst_41 = arith.constant dense<0.000000e+00> : vector<8xf32>
    %87 = vector.multi_reduction <add>, %86, %cst_41 [1] : vector<8x32xf32> to vector<8xf32>
    %88 = vector.shape_cast %87 : vector<8xf32> to vector<8x1xf32>
    %cst_42 = arith.constant 3.200000e+01 : f32
    %89 = vector.broadcast %cst_42 : f32 to vector<8x1xf32>
    %90 = arith.divf %88, %89 : vector<8x1xf32>
    %91 = vector.broadcast %83 : vector<8x1xf32> to vector<8x32xf32>
    %92 = arith.subf %75, %91 : vector<8x32xf32>
    %cst_43 = arith.constant 9.99999996E-13 : f32
    %93 = vector.broadcast %cst_43 : f32 to vector<8x1xf32>
    %94 = arith.addf %90, %93 : vector<8x1xf32>
    %95 = math.rsqrt %94 : vector<8x1xf32>
    %96 = vector.broadcast %95 : vector<8x1xf32> to vector<8x32xf32>
    %97 = arith.mulf %92, %96 : vector<8x32xf32>
    %98 = vector.broadcast %77 : vector<1x32xf32> to vector<8x32xf32>
    %99 = arith.mulf %97, %98 : vector<8x32xf32>
    %100 = vector.broadcast %79 : vector<1x32xf32> to vector<8x32xf32>
    %101 = arith.addf %99, %100 : vector<8x32xf32>
    %102 = arith.truncf %101 : vector<8x32xf32> to vector<8x32xbf16>
    %c0_44 = arith.constant 0 : index
    %c0_45 = arith.constant 0 : index
    %c0_46 = arith.constant 0 : index
    %103 = vector.load %arg12[%c0_44, %c0_45, %c0_46] : memref<2x32x128xbf16, #tpu.memory_space<vmem>>, vector<1x32x128xbf16>
    %104 = vector.shape_cast %103 : vector<1x32x128xbf16> to vector<32x128xbf16>
    %cst_47 = arith.constant dense<0.000000e+00> : vector<8x128xf32>
    %105 = tpu.matmul %102, %104, %cst_47 {dimension_numbers = #tpu.dot_dimension_numbers<[1], [0], [0], [1], [0, 0, 1, 1], [], []>} : vector<8x32xbf16>, vector<32x128xbf16>, vector<8x128xf32> -> vector<8x128xf32>
    %c0_48 = arith.constant 0 : index
    %c0_49 = arith.constant 0 : index
    %c0_50 = arith.constant 0 : index
    %106 = vector.load %arg13[%c0_48, %c0_49, %c0_50] : memref<2x1x128xf32, #tpu.memory_space<vmem>>, vector<1x1x128xf32>
    %107 = vector.shape_cast %106 : vector<1x1x128xf32> to vector<1x128xf32>
    %108 = vector.broadcast %107 : vector<1x128xf32> to vector<8x128xf32>
    %109 = arith.addf %105, %108 : vector<8x128xf32>
    %110 = arith.mulf %109, %109 : vector<8x128xf32>
    %111 = arith.mulf %109, %110 : vector<8x128xf32>
    %cst_51 = arith.constant 4.471500e-02 : f32
    %112 = vector.broadcast %cst_51 : f32 to vector<8x128xf32>
    %113 = arith.mulf %112, %111 : vector<8x128xf32>
    %114 = arith.addf %109, %113 : vector<8x128xf32>
    %cst_52 = arith.constant 0.797884583 : f32
    %115 = vector.broadcast %cst_52 : f32 to vector<8x128xf32>
    %116 = arith.mulf %115, %114 : vector<8x128xf32>
    %117 = math.tanh %116 : vector<8x128xf32>
    %cst_53 = arith.constant 1.000000e+00 : f32
    %118 = vector.broadcast %cst_53 : f32 to vector<8x128xf32>
    %119 = arith.addf %118, %117 : vector<8x128xf32>
    %cst_54 = arith.constant 5.000000e-01 : f32
    %120 = vector.broadcast %cst_54 : f32 to vector<8x128xf32>
    %121 = arith.mulf %120, %119 : vector<8x128xf32>
    %122 = arith.mulf %109, %121 : vector<8x128xf32>
    %123 = arith.truncf %122 : vector<8x128xf32> to vector<8x128xbf16>
    %c0_55 = arith.constant 0 : index
    %c0_56 = arith.constant 0 : index
    %c0_57 = arith.constant 0 : index
    %124 = vector.load %arg14[%c0_55, %c0_56, %c0_57] : memref<2x128x32xbf16, #tpu.memory_space<vmem>>, vector<1x128x32xbf16>
    %125 = vector.shape_cast %124 : vector<1x128x32xbf16> to vector<128x32xbf16>
    %cst_58 = arith.constant dense<0.000000e+00> : vector<8x32xf32>
    %126 = tpu.matmul %123, %125, %cst_58 {dimension_numbers = #tpu.dot_dimension_numbers<[1], [0], [0], [1], [0, 0, 1, 1], [], []>} : vector<8x128xbf16>, vector<128x32xbf16>, vector<8x32xf32> -> vector<8x32xf32>
    %c0_59 = arith.constant 0 : index
    %c0_60 = arith.constant 0 : index
    %c0_61 = arith.constant 0 : index
    %127 = vector.load %arg15[%c0_59, %c0_60, %c0_61] : memref<2x1x32xf32, #tpu.memory_space<vmem>>, vector<1x1x32xf32>
    %128 = vector.shape_cast %127 : vector<1x1x32xf32> to vector<1x32xf32>
    %129 = vector.broadcast %128 : vector<1x32xf32> to vector<8x32xf32>
    %130 = arith.addf %126, %129 : vector<8x32xf32>
    %131 = arith.addf %101, %130 : vector<8x32xf32>
    %c0_62 = arith.constant 0 : index
    %c0_63 = arith.constant 0 : index
    %c0_64 = arith.constant 0 : index
    %132 = vector.load %arg16[%c0_62, %c0_63, %c0_64] : memref<2x1x32xf32, #tpu.memory_space<vmem>>, vector<1x1x32xf32>
    %133 = vector.shape_cast %132 : vector<1x1x32xf32> to vector<1x32xf32>
    %c0_65 = arith.constant 0 : index
    %c0_66 = arith.constant 0 : index
    %c0_67 = arith.constant 0 : index
    %134 = vector.load %arg17[%c0_65, %c0_66, %c0_67] : memref<2x1x32xf32, #tpu.memory_space<vmem>>, vector<1x1x32xf32>
    %135 = vector.shape_cast %134 : vector<1x1x32xf32> to vector<1x32xf32>
    %cst_68 = arith.constant dense<0.000000e+00> : vector<8xf32>
    %136 = vector.multi_reduction <add>, %131, %cst_68 [1] : vector<8x32xf32> to vector<8xf32>
    %137 = vector.shape_cast %136 : vector<8xf32> to vector<8x1xf32>
    %cst_69 = arith.constant 3.200000e+01 : f32
    %138 = vector.broadcast %cst_69 : f32 to vector<8x1xf32>
    %139 = arith.divf %137, %138 : vector<8x1xf32>
    %140 = vector.broadcast %139 : vector<8x1xf32> to vector<8x32xf32>
    %141 = arith.subf %131, %140 : vector<8x32xf32>
    %142 = arith.mulf %141, %141 : vector<8x32xf32>
    %cst_70 = arith.constant dense<0.000000e+00> : vector<8xf32>
    %143 = vector.multi_reduction <add>, %142, %cst_70 [1] : vector<8x32xf32> to vector<8xf32>
    %144 = vector.shape_cast %143 : vector<8xf32> to vector<8x1xf32>
    %cst_71 = arith.constant 3.200000e+01 : f32
    %145 = vector.broadcast %cst_71 : f32 to vector<8x1xf32>
    %146 = arith.divf %144, %145 : vector<8x1xf32>
    %147 = vector.broadcast %139 : vector<8x1xf32> to vector<8x32xf32>
    %148 = arith.subf %131, %147 : vector<8x32xf32>
    %cst_72 = arith.constant 9.99999996E-13 : f32
    %149 = vector.broadcast %cst_72 : f32 to vector<8x1xf32>
    %150 = arith.addf %146, %149 : vector<8x1xf32>
    %151 = math.rsqrt %150 : vector<8x1xf32>
    %152 = vector.broadcast %151 : vector<8x1xf32> to vector<8x32xf32>
    %153 = arith.mulf %148, %152 : vector<8x32xf32>
    %154 = vector.broadcast %133 : vector<1x32xf32> to vector<8x32xf32>
    %155 = arith.mulf %153, %154 : vector<8x32xf32>
    %156 = vector.broadcast %135 : vector<1x32xf32> to vector<8x32xf32>
    %157 = arith.addf %155, %156 : vector<8x32xf32>
    %158 = arith.truncf %157 : vector<8x32xf32> to vector<8x32xbf16>
    %c1 = arith.constant 1 : index
    %c0_73 = arith.constant 0 : index
    %c0_74 = arith.constant 0 : index
    %159 = vector.load %arg6[%c1, %c0_73, %c0_74] : memref<2x32x96xbf16, #tpu.memory_space<vmem>>, vector<1x32x96xbf16>
    %160 = vector.shape_cast %159 : vector<1x32x96xbf16> to vector<32x96xbf16>
    %cst_75 = arith.constant dense<0.000000e+00> : vector<8x96xf32>
    %161 = tpu.matmul %158, %160, %cst_75 {dimension_numbers = #tpu.dot_dimension_numbers<[1], [0], [0], [1], [0, 0, 1, 1], [], []>} : vector<8x32xbf16>, vector<32x96xbf16>, vector<8x96xf32> -> vector<8x96xf32>
    %c1_76 = arith.constant 1 : index
    %c0_77 = arith.constant 0 : index
    %c0_78 = arith.constant 0 : index
    %162 = vector.load %arg7[%c1_76, %c0_77, %c0_78] : memref<2x1x96xf32, #tpu.memory_space<vmem>>, vector<1x1x96xf32>
    %163 = vector.shape_cast %162 : vector<1x1x96xf32> to vector<1x96xf32>
    %164 = vector.broadcast %163 : vector<1x96xf32> to vector<8x96xf32>
    %165 = arith.addf %161, %164 : vector<8x96xf32>
    %166 = vector.extract_strided_slice %165 {offsets = [0, 0], sizes = [8, 32], strides = [1, 1]} : vector<8x96xf32> to vector<8x32xf32>
    %167 = vector.extract_strided_slice %165 {offsets = [0, 32], sizes = [8, 32], strides = [1, 1]} : vector<8x96xf32> to vector<8x32xf32>
    %168 = vector.extract_strided_slice %165 {offsets = [0, 64], sizes = [8, 32], strides = [1, 1]} : vector<8x96xf32> to vector<8x32xf32>
    %169 = tpu.concatenate %166, %166, %166, %166 in 0 : vector<8x32xf32>, vector<8x32xf32>, vector<8x32xf32>, vector<8x32xf32> -> vector<32x32xf32>
    %170 = arith.mulf %169, %28 : vector<32x32xf32>
    %171 = arith.truncf %170 : vector<32x32xf32> to vector<32x32xbf16>
    %172 = arith.truncf %167 : vector<8x32xf32> to vector<8x32xbf16>
    %cst_79 = arith.constant dense<0.000000e+00> : vector<32x8xf32>
    %173 = tpu.matmul %171, %172, %cst_79 {dimension_numbers = #tpu.dot_dimension_numbers<[1], [1], [0], [0], [0, 0, 1, 0], [], []>} : vector<32x32xbf16>, vector<8x32xbf16>, vector<32x8xf32> -> vector<32x8xf32>
    %174 = arith.addf %173, %27 : vector<32x8xf32>
    %cst_80 = arith.constant dense<0xFF800000> : vector<32xf32>
    %175 = vector.multi_reduction <maximumf>, %174, %cst_80 [1] : vector<32x8xf32> to vector<32xf32>
    %176 = vector.shape_cast %175 : vector<32xf32> to vector<32x1xf32>
    %177 = vector.broadcast %176 : vector<32x1xf32> to vector<32x8xf32>
    %178 = arith.subf %174, %177 : vector<32x8xf32>
    %179 = math.exp %178 : vector<32x8xf32>
    %cst_81 = arith.constant dense<0.000000e+00> : vector<32xf32>
    %180 = vector.multi_reduction <add>, %179, %cst_81 [1] : vector<32x8xf32> to vector<32xf32>
    %181 = vector.shape_cast %180 : vector<32xf32> to vector<32x1xf32>
    %182 = tpu.reciprocal %181 {approx = true} : vector<32x1xf32> -> vector<32x1xf32>
    %183 = vector.broadcast %182 : vector<32x1xf32> to vector<32x8xf32>
    %184 = arith.mulf %179, %183 : vector<32x8xf32>
    %185 = arith.truncf %184 : vector<32x8xf32> to vector<32x8xbf16>
    %186 = arith.truncf %168 : vector<8x32xf32> to vector<8x32xbf16>
    %cst_82 = arith.constant dense<0.000000e+00> : vector<32x32xf32>
    %187 = tpu.matmul %185, %186, %cst_82 {dimension_numbers = #tpu.dot_dimension_numbers<[1], [0], [0], [1], [0, 0, 1, 1], [], []>} : vector<32x8xbf16>, vector<8x32xbf16>, vector<32x32xf32> -> vector<32x32xf32>
    %188 = arith.mulf %187, %28 : vector<32x32xf32>
    %189 = vector.extract_strided_slice %188 {offsets = [0, 0], sizes = [8, 32], strides = [1, 1]} : vector<32x32xf32> to vector<8x32xf32>
    %190 = vector.extract_strided_slice %188 {offsets = [8, 0], sizes = [8, 32], strides = [1, 1]} : vector<32x32xf32> to vector<8x32xf32>
    %191 = arith.addf %189, %190 : vector<8x32xf32>
    %192 = vector.extract_strided_slice %188 {offsets = [16, 0], sizes = [8, 32], strides = [1, 1]} : vector<32x32xf32> to vector<8x32xf32>
    %193 = arith.addf %191, %192 : vector<8x32xf32>
    %194 = vector.extract_strided_slice %188 {offsets = [24, 0], sizes = [8, 32], strides = [1, 1]} : vector<32x32xf32> to vector<8x32xf32>
    %195 = arith.addf %193, %194 : vector<8x32xf32>
    %196 = arith.truncf %195 : vector<8x32xf32> to vector<8x32xbf16>
    %c1_83 = arith.constant 1 : index
    %c0_84 = arith.constant 0 : index
    %c0_85 = arith.constant 0 : index
    %197 = vector.load %arg8[%c1_83, %c0_84, %c0_85] : memref<2x32x32xbf16, #tpu.memory_space<vmem>>, vector<1x32x32xbf16>
    %198 = vector.shape_cast %197 : vector<1x32x32xbf16> to vector<32x32xbf16>
    %cst_86 = arith.constant dense<0.000000e+00> : vector<8x32xf32>
    %199 = tpu.matmul %196, %198, %cst_86 {dimension_numbers = #tpu.dot_dimension_numbers<[1], [0], [0], [1], [0, 0, 1, 1], [], []>} : vector<8x32xbf16>, vector<32x32xbf16>, vector<8x32xf32> -> vector<8x32xf32>
    %c1_87 = arith.constant 1 : index
    %c0_88 = arith.constant 0 : index
    %c0_89 = arith.constant 0 : index
    %200 = vector.load %arg9[%c1_87, %c0_88, %c0_89] : memref<2x1x32xf32, #tpu.memory_space<vmem>>, vector<1x1x32xf32>
    %201 = vector.shape_cast %200 : vector<1x1x32xf32> to vector<1x32xf32>
    %202 = vector.broadcast %201 : vector<1x32xf32> to vector<8x32xf32>
    %203 = arith.addf %199, %202 : vector<8x32xf32>
    %204 = arith.addf %157, %203 : vector<8x32xf32>
    %c1_90 = arith.constant 1 : index
    %c0_91 = arith.constant 0 : index
    %c0_92 = arith.constant 0 : index
    %205 = vector.load %arg10[%c1_90, %c0_91, %c0_92] : memref<2x1x32xf32, #tpu.memory_space<vmem>>, vector<1x1x32xf32>
    %206 = vector.shape_cast %205 : vector<1x1x32xf32> to vector<1x32xf32>
    %c1_93 = arith.constant 1 : index
    %c0_94 = arith.constant 0 : index
    %c0_95 = arith.constant 0 : index
    %207 = vector.load %arg11[%c1_93, %c0_94, %c0_95] : memref<2x1x32xf32, #tpu.memory_space<vmem>>, vector<1x1x32xf32>
    %208 = vector.shape_cast %207 : vector<1x1x32xf32> to vector<1x32xf32>
    %cst_96 = arith.constant dense<0.000000e+00> : vector<8xf32>
    %209 = vector.multi_reduction <add>, %204, %cst_96 [1] : vector<8x32xf32> to vector<8xf32>
    %210 = vector.shape_cast %209 : vector<8xf32> to vector<8x1xf32>
    %cst_97 = arith.constant 3.200000e+01 : f32
    %211 = vector.broadcast %cst_97 : f32 to vector<8x1xf32>
    %212 = arith.divf %210, %211 : vector<8x1xf32>
    %213 = vector.broadcast %212 : vector<8x1xf32> to vector<8x32xf32>
    %214 = arith.subf %204, %213 : vector<8x32xf32>
    %215 = arith.mulf %214, %214 : vector<8x32xf32>
    %cst_98 = arith.constant dense<0.000000e+00> : vector<8xf32>
    %216 = vector.multi_reduction <add>, %215, %cst_98 [1] : vector<8x32xf32> to vector<8xf32>
    %217 = vector.shape_cast %216 : vector<8xf32> to vector<8x1xf32>
    %cst_99 = arith.constant 3.200000e+01 : f32
    %218 = vector.broadcast %cst_99 : f32 to vector<8x1xf32>
    %219 = arith.divf %217, %218 : vector<8x1xf32>
    %220 = vector.broadcast %212 : vector<8x1xf32> to vector<8x32xf32>
    %221 = arith.subf %204, %220 : vector<8x32xf32>
    %cst_100 = arith.constant 9.99999996E-13 : f32
    %222 = vector.broadcast %cst_100 : f32 to vector<8x1xf32>
    %223 = arith.addf %219, %222 : vector<8x1xf32>
    %224 = math.rsqrt %223 : vector<8x1xf32>
    %225 = vector.broadcast %224 : vector<8x1xf32> to vector<8x32xf32>
    %226 = arith.mulf %221, %225 : vector<8x32xf32>
    %227 = vector.broadcast %206 : vector<1x32xf32> to vector<8x32xf32>
    %228 = arith.mulf %226, %227 : vector<8x32xf32>
    %229 = vector.broadcast %208 : vector<1x32xf32> to vector<8x32xf32>
    %230 = arith.addf %228, %229 : vector<8x32xf32>
    %231 = arith.truncf %230 : vector<8x32xf32> to vector<8x32xbf16>
    %c1_101 = arith.constant 1 : index
    %c0_102 = arith.constant 0 : index
    %c0_103 = arith.constant 0 : index
    %232 = vector.load %arg12[%c1_101, %c0_102, %c0_103] : memref<2x32x128xbf16, #tpu.memory_space<vmem>>, vector<1x32x128xbf16>
    %233 = vector.shape_cast %232 : vector<1x32x128xbf16> to vector<32x128xbf16>
    %cst_104 = arith.constant dense<0.000000e+00> : vector<8x128xf32>
    %234 = tpu.matmul %231, %233, %cst_104 {dimension_numbers = #tpu.dot_dimension_numbers<[1], [0], [0], [1], [0, 0, 1, 1], [], []>} : vector<8x32xbf16>, vector<32x128xbf16>, vector<8x128xf32> -> vector<8x128xf32>
    %c1_105 = arith.constant 1 : index
    %c0_106 = arith.constant 0 : index
    %c0_107 = arith.constant 0 : index
    %235 = vector.load %arg13[%c1_105, %c0_106, %c0_107] : memref<2x1x128xf32, #tpu.memory_space<vmem>>, vector<1x1x128xf32>
    %236 = vector.shape_cast %235 : vector<1x1x128xf32> to vector<1x128xf32>
    %237 = vector.broadcast %236 : vector<1x128xf32> to vector<8x128xf32>
    %238 = arith.addf %234, %237 : vector<8x128xf32>
    %239 = arith.mulf %238, %238 : vector<8x128xf32>
    %240 = arith.mulf %238, %239 : vector<8x128xf32>
    %cst_108 = arith.constant 4.471500e-02 : f32
    %241 = vector.broadcast %cst_108 : f32 to vector<8x128xf32>
    %242 = arith.mulf %241, %240 : vector<8x128xf32>
    %243 = arith.addf %238, %242 : vector<8x128xf32>
    %cst_109 = arith.constant 0.797884583 : f32
    %244 = vector.broadcast %cst_109 : f32 to vector<8x128xf32>
    %245 = arith.mulf %244, %243 : vector<8x128xf32>
    %246 = math.tanh %245 : vector<8x128xf32>
    %cst_110 = arith.constant 1.000000e+00 : f32
    %247 = vector.broadcast %cst_110 : f32 to vector<8x128xf32>
    %248 = arith.addf %247, %246 : vector<8x128xf32>
    %cst_111 = arith.constant 5.000000e-01 : f32
    %249 = vector.broadcast %cst_111 : f32 to vector<8x128xf32>
    %250 = arith.mulf %249, %248 : vector<8x128xf32>
    %251 = arith.mulf %238, %250 : vector<8x128xf32>
    %252 = arith.truncf %251 : vector<8x128xf32> to vector<8x128xbf16>
    %c1_112 = arith.constant 1 : index
    %c0_113 = arith.constant 0 : index
    %c0_114 = arith.constant 0 : index
    %253 = vector.load %arg14[%c1_112, %c0_113, %c0_114] : memref<2x128x32xbf16, #tpu.memory_space<vmem>>, vector<1x128x32xbf16>
    %254 = vector.shape_cast %253 : vector<1x128x32xbf16> to vector<128x32xbf16>
    %cst_115 = arith.constant dense<0.000000e+00> : vector<8x32xf32>
    %255 = tpu.matmul %252, %254, %cst_115 {dimension_numbers = #tpu.dot_dimension_numbers<[1], [0], [0], [1], [0, 0, 1, 1], [], []>} : vector<8x128xbf16>, vector<128x32xbf16>, vector<8x32xf32> -> vector<8x32xf32>
    %c1_116 = arith.constant 1 : index
    %c0_117 = arith.constant 0 : index
    %c0_118 = arith.constant 0 : index
    %256 = vector.load %arg15[%c1_116, %c0_117, %c0_118] : memref<2x1x32xf32, #tpu.memory_space<vmem>>, vector<1x1x32xf32>
    %257 = vector.shape_cast %256 : vector<1x1x32xf32> to vector<1x32xf32>
    %258 = vector.broadcast %257 : vector<1x32xf32> to vector<8x32xf32>
    %259 = arith.addf %255, %258 : vector<8x32xf32>
    %260 = arith.addf %230, %259 : vector<8x32xf32>
    %c1_119 = arith.constant 1 : index
    %c0_120 = arith.constant 0 : index
    %c0_121 = arith.constant 0 : index
    %261 = vector.load %arg16[%c1_119, %c0_120, %c0_121] : memref<2x1x32xf32, #tpu.memory_space<vmem>>, vector<1x1x32xf32>
    %262 = vector.shape_cast %261 : vector<1x1x32xf32> to vector<1x32xf32>
    %c1_122 = arith.constant 1 : index
    %c0_123 = arith.constant 0 : index
    %c0_124 = arith.constant 0 : index
    %263 = vector.load %arg17[%c1_122, %c0_123, %c0_124] : memref<2x1x32xf32, #tpu.memory_space<vmem>>, vector<1x1x32xf32>
    %264 = vector.shape_cast %263 : vector<1x1x32xf32> to vector<1x32xf32>
    %cst_125 = arith.constant dense<0.000000e+00> : vector<8xf32>
    %265 = vector.multi_reduction <add>, %260, %cst_125 [1] : vector<8x32xf32> to vector<8xf32>
    %266 = vector.shape_cast %265 : vector<8xf32> to vector<8x1xf32>
    %cst_126 = arith.constant 3.200000e+01 : f32
    %267 = vector.broadcast %cst_126 : f32 to vector<8x1xf32>
    %268 = arith.divf %266, %267 : vector<8x1xf32>
    %269 = vector.broadcast %268 : vector<8x1xf32> to vector<8x32xf32>
    %270 = arith.subf %260, %269 : vector<8x32xf32>
    %271 = arith.mulf %270, %270 : vector<8x32xf32>
    %cst_127 = arith.constant dense<0.000000e+00> : vector<8xf32>
    %272 = vector.multi_reduction <add>, %271, %cst_127 [1] : vector<8x32xf32> to vector<8xf32>
    %273 = vector.shape_cast %272 : vector<8xf32> to vector<8x1xf32>
    %cst_128 = arith.constant 3.200000e+01 : f32
    %274 = vector.broadcast %cst_128 : f32 to vector<8x1xf32>
    %275 = arith.divf %273, %274 : vector<8x1xf32>
    %276 = vector.broadcast %268 : vector<8x1xf32> to vector<8x32xf32>
    %277 = arith.subf %260, %276 : vector<8x32xf32>
    %cst_129 = arith.constant 9.99999996E-13 : f32
    %278 = vector.broadcast %cst_129 : f32 to vector<8x1xf32>
    %279 = arith.addf %275, %278 : vector<8x1xf32>
    %280 = math.rsqrt %279 : vector<8x1xf32>
    %281 = vector.broadcast %280 : vector<8x1xf32> to vector<8x32xf32>
    %282 = arith.mulf %277, %281 : vector<8x32xf32>
    %283 = vector.broadcast %262 : vector<1x32xf32> to vector<8x32xf32>
    %284 = arith.mulf %282, %283 : vector<8x32xf32>
    %285 = vector.broadcast %264 : vector<1x32xf32> to vector<8x32xf32>
    %286 = arith.addf %284, %285 : vector<8x32xf32>
    %287 = arith.truncf %286 : vector<8x32xf32> to vector<8x32xbf16>
    %c0_130 = arith.constant 0 : index
    %c0_131 = arith.constant 0 : index
    %288 = vector.load %arg18[%c0_130, %c0_131] : memref<32x128xbf16, #tpu.memory_space<vmem>>, vector<32x128xbf16>
    %cst_132 = arith.constant dense<0.000000e+00> : vector<8x128xf32>
    %289 = tpu.matmul %287, %288, %cst_132 {dimension_numbers = #tpu.dot_dimension_numbers<[1], [0], [0], [1], [0, 0, 1, 1], [], []>} : vector<8x32xbf16>, vector<32x128xbf16>, vector<8x128xf32> -> vector<8x128xf32>
    %c0_133 = arith.constant 0 : index
    %c0_134 = arith.constant 0 : index
    %290 = vector.load %arg19[%c0_133, %c0_134] : memref<1x128xf32, #tpu.memory_space<vmem>>, vector<1x128xf32>
    %291 = vector.broadcast %290 : vector<1x128xf32> to vector<8x128xf32>
    %292 = arith.addf %289, %291 : vector<8x128xf32>
    %c0_135 = arith.constant 0 : index
    %c0_136 = arith.constant 0 : index
    %c0_137 = arith.constant 0 : index
    %293 = vector.load %arg22[%c0_135, %c0_136, %c0_137] : memref<1x8x128xf32, #tpu.memory_space<vmem>>, vector<1x8x128xf32>
    %294 = vector.shape_cast %293 : vector<1x8x128xf32> to vector<8x128xf32>
    %295 = vector.shape_cast %292 : vector<8x128xf32> to vector<1x8x128xf32>
    tpu.vector_store %arg22[%c0_135, %c0_136, %c0_137], %295 {strides = array<i32>} : memref<1x8x128xf32, #tpu.memory_space<vmem>>, vector<1x8x128xf32>,
    %c0_138 = arith.constant 0 : index
    %c0_139 = arith.constant 0 : index
    %c0_140 = arith.constant 0 : index
    %296 = vector.load %arg20[%c0_138, %c0_139, %c0_140] : memref<1x8x1xi32, #tpu.memory_space<vmem>>, vector<1x8x1xi32>
    %297 = vector.shape_cast %296 : vector<1x8x1xi32> to vector<8x1xi32>
    %c0_141 = arith.constant 0 : index
    %c0_142 = arith.constant 0 : index
    %c0_143 = arith.constant 0 : index
    %298 = vector.load %arg21[%c0_141, %c0_142, %c0_143] : memref<1x8x1xi32, #tpu.memory_space<vmem>>, vector<1x8x1xi32>
    %299 = vector.shape_cast %298 : vector<1x8x1xi32> to vector<8x1xi32>
    %c1_i32 = arith.constant 1 : i32
    %300 = vector.broadcast %c1_i32 : i32 to vector<8x1xi32>
    %301 = arith.cmpi eq, %299, %300 : vector<8x1xi32>
    %302 = arith.extui %301 : vector<8x1xi1> to vector<8x1xi32>
    %303 = arith.sitofp %302 : vector<8x1xi32> to vector<8x1xf32>
    %cst_144 = arith.constant dense<0xFF800000> : vector<8xf32>
    %304 = vector.multi_reduction <maximumf>, %292, %cst_144 [1] : vector<8x128xf32> to vector<8xf32>
    %305 = vector.shape_cast %304 : vector<8xf32> to vector<8x1xf32>
    %306 = vector.broadcast %305 : vector<8x1xf32> to vector<8x128xf32>
    %307 = arith.subf %292, %306 : vector<8x128xf32>
    %308 = math.exp %307 : vector<8x128xf32>
    %cst_145 = arith.constant dense<0.000000e+00> : vector<8xf32>
    %309 = vector.multi_reduction <add>, %308, %cst_145 [1] : vector<8x128xf32> to vector<8xf32>
    %310 = vector.shape_cast %309 : vector<8xf32> to vector<8x1xf32>
    %311 = math.log %310 : vector<8x1xf32>
    %312 = arith.addf %305, %311 : vector<8x1xf32>
    %313 = tpu.iota {dimensions = array<i32: 1>} : vector<8x128xi32>
    %314 = vector.broadcast %297 : vector<8x1xi32> to vector<8x128xi32>
    %315 = arith.cmpi eq, %313, %314 : vector<8x128xi32>
    %cst_146 = arith.constant 0.000000e+00 : f32
    %316 = vector.broadcast %cst_146 : f32 to vector<8x128xf32>
    %317 = arith.select %315, %292, %316 : vector<8x128xi1>, vector<8x128xf32>
    %cst_147 = arith.constant dense<0.000000e+00> : vector<8xf32>
    %318 = vector.multi_reduction <add>, %317, %cst_147 [1] : vector<8x128xf32> to vector<8xf32>
    %319 = vector.shape_cast %318 : vector<8xf32> to vector<8x1xf32>
    %320 = arith.subf %312, %319 : vector<8x1xf32>
    %321 = arith.mulf %320, %303 : vector<8x1xf32>
    %cst_148 = arith.constant dense<0.000000e+00> : vector<1xf32>
    %322 = vector.multi_reduction <add>, %321, %cst_148 [0] : vector<8x1xf32> to vector<1xf32>
    %323 = vector.shape_cast %322 : vector<1xf32> to vector<1x1xf32>
    %324 = vector.shape_cast %323 : vector<1x1xf32> to vector<1x1x1xf32>
    %c0_149 = arith.constant 0 : index
    %c0_150 = arith.constant 0 : index
    %c0_151 = arith.constant 0 : index
    %325 = vector.load %arg23[%c0_149, %c0_150, %c0_151] : memref<1x1x1xf32, #tpu.memory_space<vmem>>, vector<1x1x1xf32>
    tpu.vector_store %arg23[%c0_149, %c0_150, %c0_151], %324 {strides = array<i32>} : memref<1x1x1xf32, #tpu.memory_space<vmem>>, vector<1x1x1xf32>,
    %cst_152 = arith.constant dense<0.000000e+00> : vector<1xf32>
    %326 = vector.multi_reduction <add>, %303, %cst_152 [0] : vector<8x1xf32> to vector<1xf32>
    %327 = vector.shape_cast %326 : vector<1xf32> to vector<1x1xf32>
    %328 = vector.shape_cast %327 : vector<1x1xf32> to vector<1x1x1xf32>
    %c0_153 = arith.constant 0 : index
    %c0_154 = arith.constant 0 : index
    %c0_155 = arith.constant 0 : index
    %329 = vector.load %arg24[%c0_153, %c0_154, %c0_155] : memref<1x1x1xf32, #tpu.memory_space<vmem>>, vector<1x1x1xf32>
    tpu.vector_store %arg24[%c0_153, %c0_154, %c0_155], %328 {strides = array<i32>} : memref<1x1x1xf32, #tpu.memory_space<vmem>>, vector<1x1x1xf32>,
    return
  }
  func.func @transform_0(%arg0: i32) -> (i32, i32, i32) {
    %c0_i32 = arith.constant 0 : i32
    %c0_i32_0 = arith.constant 0 : i32
    %c0_i32_1 = arith.constant 0 : i32
    return %arg0, %c0_i32, %c0_i32_0 : i32, i32, i32
  }
  func.func @transform_1(%arg0: i32) -> (i32, i32, i32) {
    %c0_i32 = arith.constant 0 : i32
    %c0_i32_0 = arith.constant 0 : i32
    %c0_i32_1 = arith.constant 0 : i32
    return %arg0, %c0_i32, %c0_i32_0 : i32, i32, i32
  }
  func.func @transform_2(%arg0: i32) -> (i32, i32) {
    %c0_i32 = arith.constant 0 : i32
    %c0_i32_0 = arith.constant 0 : i32
    %c0_i32_1 = arith.constant 0 : i32
    return %c0_i32, %c0_i32_0 : i32, i32
  }
  func.func @transform_3(%arg0: i32) -> (i32, i32) {
    %c0_i32 = arith.constant 0 : i32
    %c0_i32_0 = arith.constant 0 : i32
    %c0_i32_1 = arith.constant 0 : i32
    return %c0_i32, %c0_i32_0 : i32, i32
  }
  func.func @transform_4(%arg0: i32) -> (i32, i32) {
    %c0_i32 = arith.constant 0 : i32
    %c0_i32_0 = arith.constant 0 : i32
    %c0_i32_1 = arith.constant 0 : i32
    return %c0_i32, %c0_i32_0 : i32, i32
  }
  func.func @transform_5(%arg0: i32) -> (i32, i32, i32) {
    %c0_i32 = arith.constant 0 : i32
    %c0_i32_0 = arith.constant 0 : i32
    %c0_i32_1 = arith.constant 0 : i32
    %c0_i32_2 = arith.constant 0 : i32
    return %c0_i32, %c0_i32_0, %c0_i32_1 : i32, i32, i32
  }
  func.func @transform_6(%arg0: i32) -> (i32, i32, i32) {
    %c0_i32 = arith.constant 0 : i32
    %c0_i32_0 = arith.constant 0 : i32
    %c0_i32_1 = arith.constant 0 : i32
    %c0_i32_2 = arith.constant 0 : i32
    return %c0_i32, %c0_i32_0, %c0_i32_1 : i32, i32, i32
  }
  func.func @transform_7(%arg0: i32) -> (i32, i32, i32) {
    %c0_i32 = arith.constant 0 : i32
    %c0_i32_0 = arith.constant 0 : i32
    %c0_i32_1 = arith.constant 0 : i32
    %c0_i32_2 = arith.constant 0 : i32
    return %c0_i32, %c0_i32_0, %c0_i32_1 : i32, i32, i32
  }
  func.func @transform_8(%arg0: i32) -> (i32, i32, i32) {
    %c0_i32 = arith.constant 0 : i32
    %c0_i32_0 = arith.constant 0 : i32
    %c0_i32_1 = arith.constant 0 : i32
    %c0_i32_2 = arith.constant 0 : i32
    return %c0_i32, %c0_i32_0, %c0_i32_1 : i32, i32, i32
  }
  func.func @transform_9(%arg0: i32) -> (i32, i32, i32) {
    %c0_i32 = arith.constant 0 : i32
    %c0_i32_0 = arith.constant 0 : i32
    %c0_i32_1 = arith.constant 0 : i32
    %c0_i32_2 = arith.constant 0 : i32
    return %c0_i32, %c0_i32_0, %c0_i32_1 : i32, i32, i32
  }
  func.func @transform_10(%arg0: i32) -> (i32, i32, i32) {
    %c0_i32 = arith.constant 0 : i32
    %c0_i32_0 = arith.constant 0 : i32
    %c0_i32_1 = arith.constant 0 : i32
    %c0_i32_2 = arith.constant 0 : i32
    return %c0_i32, %c0_i32_0, %c0_i32_1 : i32, i32, i32
  }
  func.func @transform_11(%arg0: i32) -> (i32, i32, i32) {
    %c0_i32 = arith.constant 0 : i32
    %c0_i32_0 = arith.constant 0 : i32
    %c0_i32_1 = arith.constant 0 : i32
    %c0_i32_2 = arith.constant 0 : i32
    return %c0_i32, %c0_i32_0, %c0_i32_1 : i32, i32, i32
  }
  func.func @transform_12(%arg0: i32) -> (i32, i32, i32) {
    %c0_i32 = arith.constant 0 : i32
    %c0_i32_0 = arith.constant 0 : i32
    %c0_i32_1 = arith.constant 0 : i32
    %c0_i32_2 = arith.constant 0 : i32
    return %c0_i32, %c0_i32_0, %c0_i32_1 : i32, i32, i32
  }
  func.func @transform_13(%arg0: i32) -> (i32, i32, i32) {
    %c0_i32 = arith.constant 0 : i32
    %c0_i32_0 = arith.constant 0 : i32
    %c0_i32_1 = arith.constant 0 : i32
    %c0_i32_2 = arith.constant 0 : i32
    return %c0_i32, %c0_i32_0, %c0_i32_1 : i32, i32, i32
  }
  func.func @transform_14(%arg0: i32) -> (i32, i32, i32) {
    %c0_i32 = arith.constant 0 : i32
    %c0_i32_0 = arith.constant 0 : i32
    %c0_i32_1 = arith.constant 0 : i32
    %c0_i32_2 = arith.constant 0 : i32
    return %c0_i32, %c0_i32_0, %c0_i32_1 : i32, i32, i32
  }
  func.func @transform_15(%arg0: i32) -> (i32, i32, i32) {
    %c0_i32 = arith.constant 0 : i32
    %c0_i32_0 = arith.constant 0 : i32
    %c0_i32_1 = arith.constant 0 : i32
    %c0_i32_2 = arith.constant 0 : i32
    return %c0_i32, %c0_i32_0, %c0_i32_1 : i32, i32, i32
  }
  func.func @transform_16(%arg0: i32) -> (i32, i32, i32) {
    %c0_i32 = arith.constant 0 : i32
    %c0_i32_0 = arith.constant 0 : i32
    %c0_i32_1 = arith.constant 0 : i32
    %c0_i32_2 = arith.constant 0 : i32
    return %c0_i32, %c0_i32_0, %c0_i32_1 : i32, i32, i32
  }
  func.func @transform_17(%arg0: i32) -> (i32, i32) {
    %c0_i32 = arith.constant 0 : i32
    %c0_i32_0 = arith.constant 0 : i32
    %c0_i32_1 = arith.constant 0 : i32
    return %c0_i32, %c0_i32_0 : i32, i32
  }
  func.func @transform_18(%arg0: i32) -> (i32, i32) {
    %c0_i32 = arith.constant 0 : i32
    %c0_i32_0 = arith.constant 0 : i32
    %c0_i32_1 = arith.constant 0 : i32
    return %c0_i32, %c0_i32_0 : i32, i32
  }
  func.func @transform_19(%arg0: i32) -> (i32, i32, i32) {
    %c0_i32 = arith.constant 0 : i32
    %c0_i32_0 = arith.constant 0 : i32
    %c0_i32_1 = arith.constant 0 : i32
    return %arg0, %c0_i32, %c0_i32_0 : i32, i32, i32
  }
  func.func @transform_20(%arg0: i32) -> (i32, i32, i32) {
    %c0_i32 = arith.constant 0 : i32
    %c0_i32_0 = arith.constant 0 : i32
    %c0_i32_1 = arith.constant 0 : i32
    return %arg0, %c0_i32, %c0_i32_0 : i32, i32, i32
  }
  func.func @transform_21(%arg0: i32) -> (i32, i32, i32) {
    %c0_i32 = arith.constant 0 : i32
    %c0_i32_0 = arith.constant 0 : i32
    %c0_i32_1 = arith.constant 0 : i32
    return %arg0, %c0_i32, %c0_i32_0 : i32, i32, i32
  }
  func.func @transform_22(%arg0: i32) -> (i32, i32, i32) {
    %c0_i32 = arith.constant 0 : i32
    %c0_i32_0 = arith.constant 0 : i32
    %c0_i32_1 = arith.constant 0 : i32
    return %arg0, %c0_i32, %c0_i32_0 : i32, i32, i32
  }
  func.func @transform_23(%arg0: i32) -> (i32, i32, i32) {
    %c0_i32 = arith.constant 0 : i32
    %c0_i32_0 = arith.constant 0 : i32
    %c0_i32_1 = arith.constant 0 : i32
    return %arg0, %c0_i32, %c0_i32_0 : i32, i32, i32
  }
}

</mosaic_0001>

<llo_original>
// kernel: tpu_custom_call.1
$region0: #{tpu_custom_call.1}
  #allocation0 [shape = 'u32[]', space=smem, size = 0x4, offset = 0x4, fixed_abs, tag = 'smem constant byte address 0x4 - core index']
  #allocation1 [shape = 'u32[144,128]{1,0:T(1,128)}', space=vmem, size = 0x12000, scoped, tag = 'internal scratch']
  %s0 = inlined_call_operand.vmem [shape: f32[2,8,32], index: 0, kind: input, shape index: {}]
  %s1 = inlined_call_operand.vmem [shape: f32[2,32,8], index: 1, kind: input, shape index: {}]
  %s2 = inlined_call_operand.vmem [shape: f32[32,32], index: 2, kind: input, shape index: {}]
  %s3 = inlined_call_operand.vmem [shape: f32[1,32], index: 3, kind: input, shape index: {}]
  %s4 = inlined_call_operand.vmem [shape: f32[1,32], index: 4, kind: input, shape index: {}]
  %s5 = inlined_call_operand.vmem [shape: bf16[2,32,96], index: 5, kind: input, shape index: {}]
  %s6 = inlined_call_operand.vmem [shape: f32[2,1,96], index: 6, kind: input, shape index: {}]
  %s7 = inlined_call_operand.vmem [shape: bf16[2,32,32], index: 7, kind: input, shape index: {}]
  %s8 = inlined_call_operand.vmem [shape: f32[2,1,32], index: 8, kind: input, shape index: {}]
  %s9 = inlined_call_operand.vmem [shape: f32[2,1,32], index: 9, kind: input, shape index: {}]
  %s10 = inlined_call_operand.vmem [shape: f32[2,1,32], index: 10, kind: input, shape index: {}]
  %s11 = inlined_call_operand.vmem [shape: bf16[2,32,128], index: 11, kind: input, shape index: {}]
  %s12 = inlined_call_operand.vmem [shape: f32[2,1,128], index: 12, kind: input, shape index: {}]
  %s13 = inlined_call_operand.vmem [shape: bf16[2,128,32], index: 13, kind: input, shape index: {}]
  %s14 = inlined_call_operand.vmem [shape: f32[2,1,32], index: 14, kind: input, shape index: {}]
  %s15 = inlined_call_operand.vmem [shape: f32[2,1,32], index: 15, kind: input, shape index: {}]
  %s16 = inlined_call_operand.vmem [shape: f32[2,1,32], index: 16, kind: input, shape index: {}]
  %s17 = inlined_call_operand.vmem [shape: bf16[32,128], index: 17, kind: input, shape index: {}]
  %s18 = inlined_call_operand.vmem [shape: f32[1,128], index: 18, kind: input, shape index: {}]
  %s19 = inlined_call_operand.vmem [shape: s32[2,8,1], index: 19, kind: input, shape index: {}]
  %s20 = inlined_call_operand.vmem [shape: s32[2,8,1], index: 20, kind: input, shape index: {}]
  %s21 = inlined_call_operand.hbm [shape: f32[2,8,128], index: 21, kind: output, shape index: {0}]
  %s22 = inlined_call_operand.vmem [shape: f32[2,1,1], index: 22, kind: output, shape index: {1}]
  %s23 = inlined_call_operand.vmem [shape: f32[2,1,1], index: 23, kind: output, shape index: {2}]
  %24 = xla_tuple %s21, %s22, %s23
  %s25 = sld [smem:[#allocation0]]
  $region133: #{tpu_custom_call.1} parent=0
    _
  %s27 = ssub.s32 1, %s25
  %s28 = scalar_select 0, %s27, %s25
  $region1: #{tpu_custom_call.1} parent=0
    #allocation2 [shape = 'u8[8192]{0}', space=vmem, size = 0x2000, scoped, tag = 'output window, operand 0']
    #allocation3 [shape = 's32[2]{0}', space=sflag, size = 0x8, scoped, tag = 'scoped memory for tpu_custom_call.1']
    %29 = vsyncpa [#allocation3], 0
    %s30 = scalar_lea.sflag [#allocation3], 1
    %31 = vsyncpa %s30, 0
    loop: start=0, step=1, limit=4
    $region2: #{tpu_custom_call.1} parent=1 // loop_pre_header
      _
    $region3: #{tpu_custom_call.1} parent=1 // loop_header
      %s33 = sphi 0, %s37
      %p34 = scmp.ge.s32.totalorder %s33, 4
      %s43 = sphi 0, %s45
      %s46 = sphi 0, %s43
      %s47 = sphi 0, %s46
      %s63 = sphi 0, %s47
      %s69 = sphi 0, %s71
      %s72 = sphi 0, %s69
      %s73 = sphi 0, %s72
      %s89 = sphi 0, %s73
      %s93 = sphi 0, %s93
      %s95 = sphi 0, %s93
      %s96 = sphi 0, %s95
      %s110 = sphi 0, %s96
      %s114 = sphi 0, %s114
      %s116 = sphi 0, %s114
      %s117 = sphi 0, %s116
      %s131 = sphi 0, %s117
      %s135 = sphi 0, %s135
      %s137 = sphi 0, %s135
      %s138 = sphi 0, %s137
      %s152 = sphi 0, %s138
      %s156 = sphi 0, %s156
      %s158 = sphi 0, %s156
      %s159 = sphi 0, %s158
      %s173 = sphi 0, %s159
      %s177 = sphi 0, %s177
      %s179 = sphi 0, %s177
      %s180 = sphi 0, %s179
      %s194 = sphi 0, %s180
      %s198 = sphi 0, %s198
      %s200 = sphi 0, %s198
      %s201 = sphi 0, %s200
      %s215 = sphi 0, %s201
      %s219 = sphi 0, %s219
      %s221 = sphi 0, %s219
      %s222 = sphi 0, %s221
      %s236 = sphi 0, %s222
      %s240 = sphi 0, %s240
      %s242 = sphi 0, %s240
      %s243 = sphi 0, %s242
      %s257 = sphi 0, %s243
      %s261 = sphi 0, %s261
      %s263 = sphi 0, %s261
      %s264 = sphi 0, %s263
      %s278 = sphi 0, %s264
      %s282 = sphi 0, %s282
      %s284 = sphi 0, %s282
      %s285 = sphi 0, %s284
      %s299 = sphi 0, %s285
      %s303 = sphi 0, %s303
      %s305 = sphi 0, %s303
      %s306 = sphi 0, %s305
      %s320 = sphi 0, %s306
      %s324 = sphi 0, %s324
      %s326 = sphi 0, %s324
      %s327 = sphi 0, %s326
      %s341 = sphi 0, %s327
      %s345 = sphi 0, %s345
      %s347 = sphi 0, %s345
      %s348 = sphi 0, %s347
      %s362 = sphi 0, %s348
      %s366 = sphi 0, %s366
      %s368 = sphi 0, %s366
      %s369 = sphi 0, %s368
      %s383 = sphi 0, %s369
      %s387 = sphi 0, %s387
      %s389 = sphi 0, %s387
      %s390 = sphi 0, %s389
      %s404 = sphi 0, %s390
      %s408 = sphi 0, %s408
      %s410 = sphi 0, %s408
      %s411 = sphi 0, %s410
      %s425 = sphi 0, %s411
      %s429 = sphi 0, %s429
      %s431 = sphi 0, %s429
      %s432 = sphi 0, %s431
      %s446 = sphi 0, %s432
      %s452 = sphi 0, %s454
      %s455 = sphi 0, %s452
      %s456 = sphi 0, %s455
      %s472 = sphi 0, %s456
      %s478 = sphi 0, %s480
      %s481 = sphi 0, %s478
      %s482 = sphi 0, %s481
      %s498 = sphi 0, %s482
      %s504 = sphi 0, %s506
      %s507 = sphi 0, %s504
      %s508 = sphi 0, %s507
      %s524 = sphi 0, %s508
      %s530 = sphi 0, %s532
      %s533 = sphi 0, %s530
      %s534 = sphi 0, %s533
      %s550 = sphi 0, %s534
      %s556 = sphi 0, %s558
      %s559 = sphi 0, %s556
      %s560 = sphi 0, %s559
      %s576 = sphi 0, %s560
    $region4: #{tpu_custom_call.1} parent=1 // loop_header_branch
      %36 = sbr.rel (%p34) target = $region8
    $region5: #{tpu_custom_call.1} parent=1 // loop_body
      %s38 = ssub.s32 %s33, 1
      %s39 = ssub.s32 %s33, 2
      %s40 = sadd.s32 %s33, 1
      %s41 = ssub.s32 %s33, %s40
      %p42 = scmp.eq.s32.totalorder %s41, 0
      %s44 = sadd.s32 %s43, 1
      %s45 = scalar_select %p42, %s43, %s44
      %p48 = pneg %p42
      %p49 = scmp.eq.s32.totalorder %s33, 1
      %p50 = por %p48, %p49
      %p51 = scmp.ne.s32.totalorder %s43, %s46
      %p52 = scmp.eq.s32.totalorder %s33, 0
      %p53 = por %p51, %p52
      %p54 = scmp.ne.s32.totalorder %s43, %s46
      %p55 = scmp.eq.s32.totalorder %s38, 1
      %p56 = por %p54, %p55
      %p57 = scmp.ne.s32.totalorder %s46, %s47
      %p58 = scmp.eq.s32.totalorder %s38, 0
      %p59 = por %p57, %p58
      %p60 = scmp.ne.s32.totalorder %s46, %s47
      %p61 = scmp.eq.s32.totalorder %s39, 1
      %p62 = por %p60, %p61
      %p64 = scmp.ne.s32.totalorder %s47, %s63
      %p65 = scmp.eq.s32.totalorder %s39, 0
      %p66 = por %p64, %p65
      %s67 = ssub.s32 %s33, %s40
      %p68 = scmp.eq.s32.totalorder %s67, 0
      %s70 = sadd.s32 %s69, 1
      %s71 = scalar_select %p68, %s69, %s70
      %p74 = pneg %p68
      %p75 = scmp.eq.s32.totalorder %s33, 1
      %p76 = por %p74, %p75
      %p77 = scmp.ne.s32.totalorder %s69, %s72
      %p78 = scmp.eq.s32.totalorder %s33, 0
      %p79 = por %p77, %p78
      %p80 = scmp.ne.s32.totalorder %s69, %s72
      %p81 = scmp.eq.s32.totalorder %s38, 1
      %p82 = por %p80, %p81
      %p83 = scmp.ne.s32.totalorder %s72, %s73
      %p84 = scmp.eq.s32.totalorder %s38, 0
      %p85 = por %p83, %p84
      %p86 = scmp.ne.s32.totalorder %s72, %s73
      %p87 = scmp.eq.s32.totalorder %s39, 1
      %p88 = por %p86, %p87
      %p90 = scmp.ne.s32.totalorder %s73, %s89
      %p91 = scmp.eq.s32.totalorder %s39, 0
      %p92 = por %p90, %p91
      %s94 = sadd.s32 %s93, 1
      %p97 = scmp.eq.s32.totalorder %s33, 1
      %p98 = scmp.ne.s32.totalorder %s93, %s95
      %p99 = scmp.eq.s32.totalorder %s33, 0
      %p100 = por %p98, %p99
      %p101 = scmp.ne.s32.totalorder %s93, %s95
      %p102 = scmp.eq.s32.totalorder %s38, 1
      %p103 = por %p101, %p102
      %p104 = scmp.ne.s32.totalorder %s95, %s96
      %p105 = scmp.eq.s32.totalorder %s38, 0
      %p106 = por %p104, %p105
      %p107 = scmp.ne.s32.totalorder %s95, %s96
      %p108 = scmp.eq.s32.totalorder %s39, 1
      %p109 = por %p107, %p108
      %p111 = scmp.ne.s32.totalorder %s96, %s110
      %p112 = scmp.eq.s32.totalorder %s39, 0
      %p113 = por %p111, %p112
      %s115 = sadd.s32 %s114, 1
      %p118 = scmp.eq.s32.totalorder %s33, 1
      %p119 = scmp.ne.s32.totalorder %s114, %s116
      %p120 = scmp.eq.s32.totalorder %s33, 0
      %p121 = por %p119, %p120
      %p122 = scmp.ne.s32.totalorder %s114, %s116
      %p123 = scmp.eq.s32.totalorder %s38, 1
      %p124 = por %p122, %p123
      %p125 = scmp.ne.s32.totalorder %s116, %s117
      %p126 = scmp.eq.s32.totalorder %s38, 0
      %p127 = por %p125, %p126
      %p128 = scmp.ne.s32.totalorder %s116, %s117
      %p129 = scmp.eq.s32.totalorder %s39, 1
      %p130 = por %p128, %p129
      %p132 = scmp.ne.s32.totalorder %s117, %s131
      %p133 = scmp.eq.s32.totalorder %s39, 0
      %p134 = por %p132, %p133
      %s136 = sadd.s32 %s135, 1
      %p139 = scmp.eq.s32.totalorder %s33, 1
      %p140 = scmp.ne.s32.totalorder %s135, %s137
      %p141 = scmp.eq.s32.totalorder %s33, 0
      %p142 = por %p140, %p141
      %p143 = scmp.ne.s32.totalorder %s135, %s137
      %p144 = scmp.eq.s32.totalorder %s38, 1
      %p145 = por %p143, %p144
      %p146 = scmp.ne.s32.totalorder %s137, %s138
      %p147 = scmp.eq.s32.totalorder %s38, 0
      %p148 = por %p146, %p147
      %p149 = scmp.ne.s32.totalorder %s137, %s138
      %p150 = scmp.eq.s32.totalorder %s39, 1
      %p151 = por %p149, %p150
      %p153 = scmp.ne.s32.totalorder %s138, %s152
      %p154 = scmp.eq.s32.totalorder %s39, 0
      %p155 = por %p153, %p154
      %s157 = sadd.s32 %s156, 1
      %p160 = scmp.eq.s32.totalorder %s33, 1
      %p161 = scmp.ne.s32.totalorder %s156, %s158
      %p162 = scmp.eq.s32.totalorder %s33, 0
      %p163 = por %p161, %p162
      %p164 = scmp.ne.s32.totalorder %s156, %s158
      %p165 = scmp.eq.s32.totalorder %s38, 1
      %p166 = por %p164, %p165
      %p167 = scmp.ne.s32.totalorder %s158, %s159
      %p168 = scmp.eq.s32.totalorder %s38, 0
      %p169 = por %p167, %p168
      %p170 = scmp.ne.s32.totalorder %s158, %s159
      %p171 = scmp.eq.s32.totalorder %s39, 1
      %p172 = por %p170, %p171
      %p174 = scmp.ne.s32.totalorder %s159, %s173
      %p175 = scmp.eq.s32.totalorder %s39, 0
      %p176 = por %p174, %p175
      %s178 = sadd.s32 %s177, 1
      %p181 = scmp.eq.s32.totalorder %s33, 1
      %p182 = scmp.ne.s32.totalorder %s177, %s179
      %p183 = scmp.eq.s32.totalorder %s33, 0
      %p184 = por %p182, %p183
      %p185 = scmp.ne.s32.totalorder %s177, %s179
      %p186 = scmp.eq.s32.totalorder %s38, 1
      %p187 = por %p185, %p186
      %p188 = scmp.ne.s32.totalorder %s179, %s180
      %p189 = scmp.eq.s32.totalorder %s38, 0
      %p190 = por %p188, %p189
      %p191 = scmp.ne.s32.totalorder %s179, %s180
      %p192 = scmp.eq.s32.totalorder %s39, 1
      %p193 = por %p191, %p192
      %p195 = scmp.ne.s32.totalorder %s180, %s194
      %p196 = scmp.eq.s32.totalorder %s39, 0
      %p197 = por %p195, %p196
      %s199 = sadd.s32 %s198, 1
      %p202 = scmp.eq.s32.totalorder %s33, 1
      %p203 = scmp.ne.s32.totalorder %s198, %s200
      %p204 = scmp.eq.s32.totalorder %s33, 0
      %p205 = por %p203, %p204
      %p206 = scmp.ne.s32.totalorder %s198, %s200
      %p207 = scmp.eq.s32.totalorder %s38, 1
      %p208 = por %p206, %p207
      %p209 = scmp.ne.s32.totalorder %s200, %s201
      %p210 = scmp.eq.s32.totalorder %s38, 0
      %p211 = por %p209, %p210
      %p212 = scmp.ne.s32.totalorder %s200, %s201
      %p213 = scmp.eq.s32.totalorder %s39, 1
      %p214 = por %p212, %p213
      %p216 = scmp.ne.s32.totalorder %s201, %s215
      %p217 = scmp.eq.s32.totalorder %s39, 0
      %p218 = por %p216, %p217
      %s220 = sadd.s32 %s219, 1
      %p223 = scmp.eq.s32.totalorder %s33, 1
      %p224 = scmp.ne.s32.totalorder %s219, %s221
      %p225 = scmp.eq.s32.totalorder %s33, 0
      %p226 = por %p224, %p225
      %p227 = scmp.ne.s32.totalorder %s219, %s221
      %p228 = scmp.eq.s32.totalorder %s38, 1
      %p229 = por %p227, %p228
      %p230 = scmp.ne.s32.totalorder %s221, %s222
      %p231 = scmp.eq.s32.totalorder %s38, 0
      %p232 = por %p230, %p231
      %p233 = scmp.ne.s32.totalorder %s221, %s222
      %p234 = scmp.eq.s32.totalorder %s39, 1
      %p235 = por %p233, %p234
      %p237 = scmp.ne.s32.totalorder %s222, %s236
      %p238 = scmp.eq.s32.totalorder %s39, 0
      %p239 = por %p237, %p238
      %s241 = sadd.s32 %s240, 1
      %p244 = scmp.eq.s32.totalorder %s33, 1
      %p245 = scmp.ne.s32.totalorder %s240, %s242
      %p246 = scmp.eq.s32.totalorder %s33, 0
      %p247 = por %p245, %p246
      %p248 = scmp.ne.s32.totalorder %s240, %s242
      %p249 = scmp.eq.s32.totalorder %s38, 1
      %p250 = por %p248, %p249
      %p251 = scmp.ne.s32.totalorder %s242, %s243
      %p252 = scmp.eq.s32.totalorder %s38, 0
      %p253 = por %p251, %p252
      %p254 = scmp.ne.s32.totalorder %s242, %s243
      %p255 = scmp.eq.s32.totalorder %s39, 1
      %p256 = por %p254, %p255
      %p258 = scmp.ne.s32.totalorder %s243, %s257
      %p259 = scmp.eq.s32.totalorder %s39, 0
      %p260 = por %p258, %p259
      %s262 = sadd.s32 %s261, 1
      %p265 = scmp.eq.s32.totalorder %s33, 1
      %p266 = scmp.ne.s32.totalorder %s261, %s263
      %p267 = scmp.eq.s32.totalorder %s33, 0
      %p268 = por %p266, %p267
      %p269 = scmp.ne.s32.totalorder %s261, %s263
      %p270 = scmp.eq.s32.totalorder %s38, 1
      %p271 = por %p269, %p270
      %p272 = scmp.ne.s32.totalorder %s263, %s264
      %p273 = scmp.eq.s32.totalorder %s38, 0
      %p274 = por %p272, %p273
      %p275 = scmp.ne.s32.totalorder %s263, %s264
      %p276 = scmp.eq.s32.totalorder %s39, 1
      %p277 = por %p275, %p276
      %p279 = scmp.ne.s32.totalorder %s264, %s278
      %p280 = scmp.eq.s32.totalorder %s39, 0
      %p281 = por %p279, %p280
      %s283 = sadd.s32 %s282, 1
      %p286 = scmp.eq.s32.totalorder %s33, 1
      %p287 = scmp.ne.s32.totalorder %s282, %s284
      %p288 = scmp.eq.s32.totalorder %s33, 0
      %p289 = por %p287, %p288
      %p290 = scmp.ne.s32.totalorder %s282, %s284
      %p291 = scmp.eq.s32.totalorder %s38, 1
      %p292 = por %p290, %p291
      %p293 = scmp.ne.s32.totalorder %s284, %s285
      %p294 = scmp.eq.s32.totalorder %s38, 0
      %p295 = por %p293, %p294
      %p296 = scmp.ne.s32.totalorder %s284, %s285
      %p297 = scmp.eq.s32.totalorder %s39, 1
      %p298 = por %p296, %p297
      %p300 = scmp.ne.s32.totalorder %s285, %s299
      %p301 = scmp.eq.s32.totalorder %s39, 0
      %p302 = por %p300, %p301
      %s304 = sadd.s32 %s303, 1
      %p307 = scmp.eq.s32.totalorder %s33, 1
      %p308 = scmp.ne.s32.totalorder %s303, %s305
      %p309 = scmp.eq.s32.totalorder %s33, 0
      %p310 = por %p308, %p309
      %p311 = scmp.ne.s32.totalorder %s303, %s305
      %p312 = scmp.eq.s32.totalorder %s38, 1
      %p313 = por %p311, %p312
      %p314 = scmp.ne.s32.totalorder %s305, %s306
      %p315 = scmp.eq.s32.totalorder %s38, 0
      %p316 = por %p314, %p315
      %p317 = scmp.ne.s32.totalorder %s305, %s306
      %p318 = scmp.eq.s32.totalorder %s39, 1
      %p319 = por %p317, %p318
      %p321 = scmp.ne.s32.totalorder %s306, %s320
      %p322 = scmp.eq.s32.totalorder %s39, 0
      %p323 = por %p321, %p322
      %s325 = sadd.s32 %s324, 1
      %p328 = scmp.eq.s32.totalorder %s33, 1
      %p329 = scmp.ne.s32.totalorder %s324, %s326
      %p330 = scmp.eq.s32.totalorder %s33, 0
      %p331 = por %p329, %p330
      %p332 = scmp.ne.s32.totalorder %s324, %s326
      %p333 = scmp.eq.s32.totalorder %s38, 1
      %p334 = por %p332, %p333
      %p335 = scmp.ne.s32.totalorder %s326, %s327
      %p336 = scmp.eq.s32.totalorder %s38, 0
      %p337 = por %p335, %p336
      %p338 = scmp.ne.s32.totalorder %s326, %s327
      %p339 = scmp.eq.s32.totalorder %s39, 1
      %p340 = por %p338, %p339
      %p342 = scmp.ne.s32.totalorder %s327, %s341
      %p343 = scmp.eq.s32.totalorder %s39, 0
      %p344 = por %p342, %p343
      %s346 = sadd.s32 %s345, 1
      %p349 = scmp.eq.s32.totalorder %s33, 1
      %p350 = scmp.ne.s32.totalorder %s345, %s347
      %p351 = scmp.eq.s32.totalorder %s33, 0
      %p352 = por %p350, %p351
      %p353 = scmp.ne.s32.totalorder %s345, %s347
      %p354 = scmp.eq.s32.totalorder %s38, 1
      %p355 = por %p353, %p354
      %p356 = scmp.ne.s32.totalorder %s347, %s348
      %p357 = scmp.eq.s32.totalorder %s38, 0
      %p358 = por %p356, %p357
      %p359 = scmp.ne.s32.totalorder %s347, %s348
      %p360 = scmp.eq.s32.totalorder %s39, 1
      %p361 = por %p359, %p360
      %p363 = scmp.ne.s32.totalorder %s348, %s362
      %p364 = scmp.eq.s32.totalorder %s39, 0
      %p365 = por %p363, %p364
      %s367 = sadd.s32 %s366, 1
      %p370 = scmp.eq.s32.totalorder %s33, 1
      %p371 = scmp.ne.s32.totalorder %s366, %s368
      %p372 = scmp.eq.s32.totalorder %s33, 0
      %p373 = por %p371, %p372
      %p374 = scmp.ne.s32.totalorder %s366, %s368
      %p375 = scmp.eq.s32.totalorder %s38, 1
      %p376 = por %p374, %p375
      %p377 = scmp.ne.s32.totalorder %s368, %s369
      %p378 = scmp.eq.s32.totalorder %s38, 0
      %p379 = por %p377, %p378
      %p380 = scmp.ne.s32.totalorder %s368, %s369
      %p381 = scmp.eq.s32.totalorder %s39, 1
      %p382 = por %p380, %p381
      %p384 = scmp.ne.s32.totalorder %s369, %s383
      %p385 = scmp.eq.s32.totalorder %s39, 0
      %p386 = por %p384, %p385
      %s388 = sadd.s32 %s387, 1
      %p391 = scmp.eq.s32.totalorder %s33, 1
      %p392 = scmp.ne.s32.totalorder %s387, %s389
      %p393 = scmp.eq.s32.totalorder %s33, 0
      %p394 = por %p392, %p393
      %p395 = scmp.ne.s32.totalorder %s387, %s389
      %p396 = scmp.eq.s32.totalorder %s38, 1
      %p397 = por %p395, %p396
      %p398 = scmp.ne.s32.totalorder %s389, %s390
      %p399 = scmp.eq.s32.totalorder %s38, 0
      %p400 = por %p398, %p399
      %p401 = scmp.ne.s32.totalorder %s389, %s390
      %p402 = scmp.eq.s32.totalorder %s39, 1
      %p403 = por %p401, %p402
      %p405 = scmp.ne.s32.totalorder %s390, %s404
      %p406 = scmp.eq.s32.totalorder %s39, 0
      %p407 = por %p405, %p406
      %s409 = sadd.s32 %s408, 1
      %p412 = scmp.eq.s32.totalorder %s33, 1
      %p413 = scmp.ne.s32.totalorder %s408, %s410
      %p414 = scmp.eq.s32.totalorder %s33, 0
      %p415 = por %p413, %p414
      %p416 = scmp.ne.s32.totalorder %s408, %s410
      %p417 = scmp.eq.s32.totalorder %s38, 1
      %p418 = por %p416, %p417
      %p419 = scmp.ne.s32.totalorder %s410, %s411
      %p420 = scmp.eq.s32.totalorder %s38, 0
      %p421 = por %p419, %p420
      %p422 = scmp.ne.s32.totalorder %s410, %s411
      %p423 = scmp.eq.s32.totalorder %s39, 1
      %p424 = por %p422, %p423
      %p426 = scmp.ne.s32.totalorder %s411, %s425
      %p427 = scmp.eq.s32.totalorder %s39, 0
      %p428 = por %p426, %p427
      %s430 = sadd.s32 %s429, 1
      %p433 = scmp.eq.s32.totalorder %s33, 1
      %p434 = scmp.ne.s32.totalorder %s429, %s431
      %p435 = scmp.eq.s32.totalorder %s33, 0
      %p436 = por %p434, %p435
      %p437 = scmp.ne.s32.totalorder %s429, %s431
      %p438 = scmp.eq.s32.totalorder %s38, 1
      %p439 = por %p437, %p438
      %p440 = scmp.ne.s32.totalorder %s431, %s432
      %p441 = scmp.eq.s32.totalorder %s38, 0
      %p442 = por %p440, %p441
      %p443 = scmp.ne.s32.totalorder %s431, %s432
      %p444 = scmp.eq.s32.totalorder %s39, 1
      %p445 = por %p443, %p444
      %p447 = scmp.ne.s32.totalorder %s432, %s446
      %p448 = scmp.eq.s32.totalorder %s39, 0
      %p449 = por %p447, %p448
      %s450 = ssub.s32 %s33, %s40
      %p451 = scmp.eq.s32.totalorder %s450, 0
      %s453 = sadd.s32 %s452, 1
      %s454 = scalar_select %p451, %s452, %s453
      %p457 = pneg %p451
      %p458 = scmp.eq.s32.totalorder %s33, 1
      %p459 = por %p457, %p458
      %p460 = scmp.ne.s32.totalorder %s452, %s455
      %p461 = scmp.eq.s32.totalorder %s33, 0
      %p462 = por %p460, %p461
      %p463 = scmp.ne.s32.totalorder %s452, %s455
      %p464 = scmp.eq.s32.totalorder %s38, 1
      %p465 = por %p463, %p464
      %p466 = scmp.ne.s32.totalorder %s455, %s456
      %p467 = scmp.eq.s32.totalorder %s38, 0
      %p468 = por %p466, %p467
      %p469 = scmp.ne.s32.totalorder %s455, %s456
      %p470 = scmp.eq.s32.totalorder %s39, 1
      %p471 = por %p469, %p470
      %p473 = scmp.ne.s32.totalorder %s456, %s472
      %p474 = scmp.eq.s32.totalorder %s39, 0
      %p475 = por %p473, %p474
      %s476 = ssub.s32 %s33, %s40
      %p477 = scmp.eq.s32.totalorder %s476, 0
      %s479 = sadd.s32 %s478, 1
      %s480 = scalar_select %p477, %s478, %s479
      %p483 = pneg %p477
      %p484 = scmp.eq.s32.totalorder %s33, 1
      %p485 = por %p483, %p484
      %p486 = scmp.ne.s32.totalorder %s478, %s481
      %p487 = scmp.eq.s32.totalorder %s33, 0
      %p488 = por %p486, %p487
      %p489 = scmp.ne.s32.totalorder %s478, %s481
      %p490 = scmp.eq.s32.totalorder %s38, 1
      %p491 = por %p489, %p490
      %p492 = scmp.ne.s32.totalorder %s481, %s482
      %p493 = scmp.eq.s32.totalorder %s38, 0
      %p494 = por %p492, %p493
      %p495 = scmp.ne.s32.totalorder %s481, %s482
      %p496 = scmp.eq.s32.totalorder %s39, 1
      %p497 = por %p495, %p496
      %p499 = scmp.ne.s32.totalorder %s482, %s498
      %p500 = scmp.eq.s32.totalorder %s39, 0
      %p501 = por %p499, %p500
      %s502 = ssub.s32 %s33, %s40
      %p503 = scmp.eq.s32.totalorder %s502, 0
      %s505 = sadd.s32 %s504, 1
      %s506 = scalar_select %p503, %s504, %s505
      %p509 = pneg %p503
      %p510 = scmp.eq.s32.totalorder %s33, 1
      %p511 = por %p509, %p510
      %p512 = scmp.ne.s32.totalorder %s504, %s507
      %p513 = scmp.eq.s32.totalorder %s33, 0
      %p514 = por %p512, %p513
      %p515 = scmp.ne.s32.totalorder %s504, %s507
      %p516 = scmp.eq.s32.totalorder %s38, 1
      %p517 = por %p515, %p516
      %p518 = scmp.ne.s32.totalorder %s507, %s508
      %p519 = scmp.eq.s32.totalorder %s38, 0
      %p520 = por %p518, %p519
      %p521 = scmp.ne.s32.totalorder %s507, %s508
      %p522 = scmp.eq.s32.totalorder %s39, 1
      %p523 = por %p521, %p522
      %p525 = scmp.ne.s32.totalorder %s508, %s524
      %p526 = scmp.eq.s32.totalorder %s39, 0
      %p527 = por %p525, %p526
      %s528 = ssub.s32 %s33, %s40
      %p529 = scmp.eq.s32.totalorder %s528, 0
      %s531 = sadd.s32 %s530, 1
      %s532 = scalar_select %p529, %s530, %s531
      %p535 = pneg %p529
      %p536 = scmp.eq.s32.totalorder %s33, 1
      %p537 = por %p535, %p536
      %p538 = scmp.ne.s32.totalorder %s530, %s533
      %p539 = scmp.eq.s32.totalorder %s33, 0
      %p540 = por %p538, %p539
      %p541 = scmp.ne.s32.totalorder %s530, %s533
      %p542 = scmp.eq.s32.totalorder %s38, 1
      %p543 = por %p541, %p542
      %p544 = scmp.ne.s32.totalorder %s533, %s534
      %p545 = scmp.eq.s32.totalorder %s38, 0
      %p546 = por %p544, %p545
      %p547 = scmp.ne.s32.totalorder %s533, %s534
      %p548 = scmp.eq.s32.totalorder %s39, 1
      %p549 = por %p547, %p548
      %p551 = scmp.ne.s32.totalorder %s534, %s550
      %p552 = scmp.eq.s32.totalorder %s39, 0
      %p553 = por %p551, %p552
      %s554 = ssub.s32 %s33, %s40
      %p555 = scmp.eq.s32.totalorder %s554, 0
      %s557 = sadd.s32 %s556, 1
      %s558 = scalar_select %p555, %s556, %s557
      %p561 = pneg %p555
      %p562 = scmp.eq.s32.totalorder %s33, 1
      %p563 = por %p561, %p562
      %p564 = scmp.ne.s32.totalorder %s556, %s559
      %p565 = scmp.eq.s32.totalorder %s33, 0
      %p566 = por %p564, %p565
      %p567 = scmp.ne.s32.totalorder %s556, %s559
      %p568 = scmp.eq.s32.totalorder %s38, 1
      %p569 = por %p567, %p568
      %p570 = scmp.ne.s32.totalorder %s559, %s560
      %p571 = scmp.eq.s32.totalorder %s38, 0
      %p572 = por %p570, %p571
      %p573 = scmp.ne.s32.totalorder %s559, %s560
      %p574 = scmp.eq.s32.totalorder %s39, 1
      %p575 = por %p573, %p574
      %p577 = scmp.ne.s32.totalorder %s560, %s576
      %p578 = scmp.eq.s32.totalorder %s39, 0
      %p579 = por %p577, %p578
      %p580 = scmp.le.s32.totalorder 1, %s33
      %p581 = scmp.lt.s32.totalorder %s33, 3
      %p582 = pnand %p580, %p581
      %p583 = pneg %p582
      // Predicated region
      $region9: #{tpu_custom_call.1} parent=5 // pred_check
        _
      $region10: #{tpu_custom_call.1} parent=5 // pred_check_branch
        %585 = sbr.rel (%p582) target = $region12
      $region11: #{tpu_custom_call.1} parent=5 // pred_region
        %s586 = ssub.s32 %s33, 1
        // Predicated region
        $region13: #{tpu_custom_call.1} parent=11 // pred_check
          %p587 = pneg %p106
        $region14: #{tpu_custom_call.1} parent=11 // pred_check_branch
          %589 = sbr.rel (%p587) target = $region16
        $region15: #{tpu_custom_call.1} parent=11 // pred_region
          _
        $region16: #{tpu_custom_call.1} parent=11 // pred_fallthru
          _
        // Predicated region
        $region17: #{tpu_custom_call.1} parent=11 // pred_check
          %p590 = pneg %p127
        $region18: #{tpu_custom_call.1} parent=11 // pred_check_branch
          %592 = sbr.rel (%p590) target = $region20
        $region19: #{tpu_custom_call.1} parent=11 // pred_region
          _
        $region20: #{tpu_custom_call.1} parent=11 // pred_fallthru
          _
        // Predicated region
        $region21: #{tpu_custom_call.1} parent=11 // pred_check
          %p593 = pneg %p148
        $region22: #{tpu_custom_call.1} parent=11 // pred_check_branch
          %595 = sbr.rel (%p593) target = $region24
        $region23: #{tpu_custom_call.1} parent=11 // pred_region
          _
        $region24: #{tpu_custom_call.1} parent=11 // pred_fallthru
          _
        // Predicated region
        $region25: #{tpu_custom_call.1} parent=11 // pred_check
          %p596 = pneg %p169
        $region26: #{tpu_custom_call.1} parent=11 // pred_check_branch
          %598 = sbr.rel (%p596) target = $region28
        $region27: #{tpu_custom_call.1} parent=11 // pred_region
          _
        $region28: #{tpu_custom_call.1} parent=11 // pred_fallthru
          _
        // Predicated region
        $region29: #{tpu_custom_call.1} parent=11 // pred_check
          %p599 = pneg %p190
        $region30: #{tpu_custom_call.1} parent=11 // pred_check_branch
          %601 = sbr.rel (%p599) target = $region32
        $region31: #{tpu_custom_call.1} parent=11 // pred_region
          _
        $region32: #{tpu_custom_call.1} parent=11 // pred_fallthru
          _
        // Predicated region
        $region33: #{tpu_custom_call.1} parent=11 // pred_check
          %p602 = pneg %p211
        $region34: #{tpu_custom_call.1} parent=11 // pred_check_branch
          %604 = sbr.rel (%p602) target = $region36
        $region35: #{tpu_custom_call.1} parent=11 // pred_region
          _
        $region36: #{tpu_custom_call.1} parent=11 // pred_fallthru
          _
        // Predicated region
        $region37: #{tpu_custom_call.1} parent=11 // pred_check
          %p605 = pneg %p232
        $region38: #{tpu_custom_call.1} parent=11 // pred_check_branch
          %607 = sbr.rel (%p605) target = $region40
        $region39: #{tpu_custom_call.1} parent=11 // pred_region
          _
        $region40: #{tpu_custom_call.1} parent=11 // pred_fallthru
          _
        // Predicated region
        $region41: #{tpu_custom_call.1} parent=11 // pred_check
          %p608 = pneg %p253
        $region42: #{tpu_custom_call.1} parent=11 // pred_check_branch
          %610 = sbr.rel (%p608) target = $region44
        $region43: #{tpu_custom_call.1} parent=11 // pred_region
          _
        $region44: #{tpu_custom_call.1} parent=11 // pred_fallthru
          _
        // Predicated region
        $region45: #{tpu_custom_call.1} parent=11 // pred_check
          %p611 = pneg %p274
        $region46: #{tpu_custom_call.1} parent=11 // pred_check_branch
          %613 = sbr.rel (%p611) target = $region48
        $region47: #{tpu_custom_call.1} parent=11 // pred_region
          _
        $region48: #{tpu_custom_call.1} parent=11 // pred_fallthru
          _
        // Predicated region
        $region49: #{tpu_custom_call.1} parent=11 // pred_check
          %p614 = pneg %p295
        $region50: #{tpu_custom_call.1} parent=11 // pred_check_branch
          %616 = sbr.rel (%p614) target = $region52
        $region51: #{tpu_custom_call.1} parent=11 // pred_region
          _
        $region52: #{tpu_custom_call.1} parent=11 // pred_fallthru
          _
        // Predicated region
        $region53: #{tpu_custom_call.1} parent=11 // pred_check
          %p617 = pneg %p316
        $region54: #{tpu_custom_call.1} parent=11 // pred_check_branch
          %619 = sbr.rel (%p617) target = $region56
        $region55: #{tpu_custom_call.1} parent=11 // pred_region
          _
        $region56: #{tpu_custom_call.1} parent=11 // pred_fallthru
          _
        // Predicated region
        $region57: #{tpu_custom_call.1} parent=11 // pred_check
          %p620 = pneg %p337
        $region58: #{tpu_custom_call.1} parent=11 // pred_check_branch
          %622 = sbr.rel (%p620) target = $region60
        $region59: #{tpu_custom_call.1} parent=11 // pred_region
          _
        $region60: #{tpu_custom_call.1} parent=11 // pred_fallthru
          _
        // Predicated region
        $region61: #{tpu_custom_call.1} parent=11 // pred_check
          %p623 = pneg %p358
        $region62: #{tpu_custom_call.1} parent=11 // pred_check_branch
          %625 = sbr.rel (%p623) target = $region64
        $region63: #{tpu_custom_call.1} parent=11 // pred_region
          _
        $region64: #{tpu_custom_call.1} parent=11 // pred_fallthru
          _
        // Predicated region
        $region65: #{tpu_custom_call.1} parent=11 // pred_check
          %p626 = pneg %p379
        $region66: #{tpu_custom_call.1} parent=11 // pred_check_branch
          %628 = sbr.rel (%p626) target = $region68
        $region67: #{tpu_custom_call.1} parent=11 // pred_region
          _
        $region68: #{tpu_custom_call.1} parent=11 // pred_fallthru
          _
        // Predicated region
        $region69: #{tpu_custom_call.1} parent=11 // pred_check
          %p629 = pneg %p400
        $region70: #{tpu_custom_call.1} parent=11 // pred_check_branch
          %631 = sbr.rel (%p629) target = $region72
        $region71: #{tpu_custom_call.1} parent=11 // pred_region
          _
        $region72: #{tpu_custom_call.1} parent=11 // pred_fallthru
          _
        // Predicated region
        $region73: #{tpu_custom_call.1} parent=11 // pred_check
          %p632 = pneg %p421
        $region74: #{tpu_custom_call.1} parent=11 // pred_check_branch
          %634 = sbr.rel (%p632) target = $region76
        $region75: #{tpu_custom_call.1} parent=11 // pred_region
          _
        $region76: #{tpu_custom_call.1} parent=11 // pred_fallthru
          _
        // Predicated region
        $region77: #{tpu_custom_call.1} parent=11 // pred_check
          %p635 = pneg %p442
        $region78: #{tpu_custom_call.1} parent=11 // pred_check_branch
          %637 = sbr.rel (%p635) target = $region80
        $region79: #{tpu_custom_call.1} parent=11 // pred_region
          _
        $region80: #{tpu_custom_call.1} parent=11 // pred_fallthru
          _
      $region12: #{tpu_custom_call.1} parent=5 // pred_fallthru
        _
      %p638 = scmp.lt.s32.totalorder %s33, 2
      // Predicated region
      $region81: #{tpu_custom_call.1} parent=5 // pred_check
        %p639 = pneg %p638
      $region82: #{tpu_custom_call.1} parent=5 // pred_check_branch
        %641 = sbr.rel (%p639) target = $region84
      $region83: #{tpu_custom_call.1} parent=5 // pred_region
        // Predicated region
        $region85: #{tpu_custom_call.1} parent=83 // pred_check
          %p642 = pneg %p53
        $region86: #{tpu_custom_call.1} parent=83 // pred_check_branch
          %644 = sbr.rel (%p642) target = $region88
        $region87: #{tpu_custom_call.1} parent=83 // pred_region
          %p645 = scmp.lt.s32.totalorder %s33, 1
          %s646 = scalar_select %p645, %s33, 1
          %s647 = smul.addr %s646, 8
          %s648 = scalar_lea.vmem %s0, %s647
        $region88: #{tpu_custom_call.1} parent=83 // pred_fallthru
          _
        // Predicated region
        $region89: #{tpu_custom_call.1} parent=83 // pred_check
          %p649 = pneg %p79
        $region90: #{tpu_custom_call.1} parent=83 // pred_check_branch
          %651 = sbr.rel (%p649) target = $region92
        $region91: #{tpu_custom_call.1} parent=83 // pred_region
          %p652 = scmp.lt.s32.totalorder %s33, 1
          %s653 = scalar_select %p652, %s33, 1
          %s654 = smul.addr %s653, 4
          %s655 = smul.addr %s654, 8
          %s656 = scalar_lea.vmem %s1, %s655
        $region92: #{tpu_custom_call.1} parent=83 // pred_fallthru
          _
        // Predicated region
        $region93: #{tpu_custom_call.1} parent=83 // pred_check
          %p657 = pneg %p462
        $region94: #{tpu_custom_call.1} parent=83 // pred_check_branch
          %659 = sbr.rel (%p657) target = $region96
        $region95: #{tpu_custom_call.1} parent=83 // pred_region
          %p660 = scmp.lt.s32.totalorder %s33, 1
          %s661 = scalar_select %p660, %s33, 1
          %s662 = smul.addr %s661, 8
          %s663 = scalar_lea.vmem %s19, %s662
        $region96: #{tpu_custom_call.1} parent=83 // pred_fallthru
          _
        // Predicated region
        $region97: #{tpu_custom_call.1} parent=83 // pred_check
          %p664 = pneg %p488
        $region98: #{tpu_custom_call.1} parent=83 // pred_check_branch
          %666 = sbr.rel (%p664) target = $region100
        $region99: #{tpu_custom_call.1} parent=83 // pred_region
          %p667 = scmp.lt.s32.totalorder %s33, 1
          %s668 = scalar_select %p667, %s33, 1
          %s669 = smul.addr %s668, 8
          %s670 = scalar_lea.vmem %s20, %s669
        $region100: #{tpu_custom_call.1} parent=83 // pred_fallthru
          _
      $region84: #{tpu_custom_call.1} parent=5 // pred_fallthru
        _
      %p671 = scmp.le.s32.totalorder 1, %s33
      %p672 = scmp.lt.s32.totalorder %s33, 3
      %p673 = pnand %p671, %p672
      %p674 = pneg %p673
      // Predicated region
      $region101: #{tpu_custom_call.1} parent=5 // pred_check
        _
      $region102: #{tpu_custom_call.1} parent=5 // pred_check_branch
        %676 = sbr.rel (%p673) target = $region104
      $region103: #{tpu_custom_call.1} parent=5 // pred_region
        %s677 = ssub.s32 %s33, 1
        %p678 = scmp.lt.s32.totalorder %s38, 1
        %s679 = scalar_select %p678, %s38, 1
        %s680 = smul.addr %s679, 8
        %s681 = scalar_lea.vmem %s0, %s680
        %p682 = pneg %p59
        %p683 = pneg %p56
        %p684 = scmp.lt.s32.totalorder %s38, 1
        %s685 = scalar_select %p684, %s38, 1
        %s686 = smul.addr %s685, 4
        %s687 = smul.addr %s686, 8
        %s688 = scalar_lea.vmem %s1, %s687
        %p689 = pneg %p85
        %p690 = pneg %p82
        %p691 = pneg %p106
        %p692 = pneg %p103
        %p693 = pneg %p127
        %p694 = pneg %p124
        %p695 = pneg %p148
        %p696 = pneg %p145
        %p697 = pneg %p169
        %p698 = pneg %p166
        %p699 = pneg %p190
        %p700 = pneg %p187
        %p701 = pneg %p211
        %p702 = pneg %p208
        %p703 = pneg %p232
        %p704 = pneg %p229
        %p705 = pneg %p253
        %p706 = pneg %p250
        %p707 = pneg %p274
        %p708 = pneg %p271
        %p709 = pneg %p295
        %p710 = pneg %p292
        %p711 = pneg %p316
        %p712 = pneg %p313
        %p713 = pneg %p337
        %p714 = pneg %p334
        %p715 = pneg %p358
        %p716 = pneg %p355
        %p717 = pneg %p379
        %p718 = pneg %p376
        %p719 = pneg %p400
        %p720 = pneg %p397
        %p721 = pneg %p421
        %p722 = pneg %p418
        %p723 = pneg %p442
        %p724 = pneg %p439
        %p725 = scmp.lt.s32.totalorder %s38, 1
        %s726 = scalar_select %p725, %s38, 1
        %s727 = smul.addr %s726, 8
        %s728 = scalar_lea.vmem %s19, %s727
        %p729 = pneg %p468
        %p730 = pneg %p465
        %p731 = scmp.lt.s32.totalorder %s38, 1
        %s732 = scalar_select %p731, %s38, 1
        %s733 = smul.addr %s732, 8
        %s734 = scalar_lea.vmem %s20, %s733
        %p735 = pneg %p494
        %p736 = pneg %p491
        %p737 = pneg %p520
        %p738 = pneg %p517
        %s739 = sand.u32 %s507, 1
        %s740 = scalar_lea.sflag [#allocation3], %s739
        %s741 = sand.u32 %s507, 1
        %s742 = smul.addr %s741, 8
        %s743 = scalar_lea.vmem [#allocation2], %s742
        %p744 = pneg %p546
        %p745 = pneg %p543
        %p746 = scmp.lt.s32.totalorder %s38, 1
        %s747 = scalar_select %p746, %s38, 1
        %s748 = scalar_lea.vmem %s22, %s747
        %p749 = pneg %p572
        %p750 = pneg %p569
        %p751 = scmp.lt.s32.totalorder %s38, 1
        %s752 = scalar_select %p751, %s38, 1
        %s753 = scalar_lea.vmem %s23, %s752
        %p754 = scmp.lt.s32.totalorder %s38, 1
        %s755 = scalar_select %p754, %s38, 1
        %s756 = smul.addr %s755, 8
        %s757 = scalar_lea.vmem %s0, %s756
        %p758 = scmp.lt.s32.totalorder %s38, 1
        %s759 = scalar_select %p758, %s38, 1
        %s760 = smul.addr %s759, 4
        %s761 = smul.addr %s760, 8
        %s762 = scalar_lea.vmem %s1, %s761
        %p763 = scmp.lt.s32.totalorder %s38, 1
        %s764 = scalar_select %p763, %s38, 1
        %s765 = smul.addr %s764, 8
        %s766 = scalar_lea.vmem %s19, %s765
        %p767 = scmp.lt.s32.totalorder %s38, 1
        %s768 = scalar_select %p767, %s38, 1
        %s769 = smul.addr %s768, 8
        %s770 = scalar_lea.vmem %s20, %s769
        %p771 = scmp.lt.s32.totalorder %s38, 1
        %s772 = scalar_select %p771, %s38, 1
        %s773 = scalar_lea.vmem %s22, %s772
        %p774 = scmp.lt.s32.totalorder %s38, 1
        %s775 = scalar_select %p774, %s38, 1
        %s776 = scalar_lea.vmem %s23, %s775
        %v778 = vld [vmem:[%s757] sm:$0xff]
        %v779 = vld [vmem:[%s3] sm:$0x1]
        %v780 = vld [vmem:[%s4] sm:$0x1]
        %vm781 = vcmask 261120
        %v782 = vsel %vm781, %v778, 0.0
        %783 = vadd.xlane.f32.xlu0 %v782
        %v784 = vpop.xlane.xlu0 %783
        %v785 = vrcp.pop 32.0
        %v786 = vmul.f32 %v784, %v785
        %v787 = vsub.f32 %v778, %v786
        %v788 = vmul.f32 %v787, %v787
        %v789 = vsel %vm781, %v788, 0.0
        %790 = vadd.xlane.f32.xlu0 %v789
        %v791 = vpop.xlane.xlu0 %790
        %v792 = vmul.f32 %v791, %v785
        %v793 = vadd.f32 %v792, 1e-12
        %v794 = vrsqrt.pop %v793
        %v795 = vmul.f32 %v787, %v794
        %v797 = vlaneseq
        %v798 = vshrl.u32 %v797, 7
        %v799 = vsub.s32 0, %v798
        %v800 = vrot.slane %v779, %v799
        %v802 = vmul.f32 %v795, %v800
        %v804 = vlaneseq
        %v805 = vshrl.u32 %v804, 7
        %v806 = vsub.s32 0, %v805
        %v807 = vrot.slane %v780, %v806
        %v809 = vadd.f32 %v802, %v807
        %v810 = vld [vmem:[%s762] sm:$0xff]
        %v811 = vld [vmem:[%s762 + $0x8] sm:$0xff]
        %v812 = vld [vmem:[%s762 + $0x10] sm:$0xff]
        %v813 = vld [vmem:[%s762 + $0x18] sm:$0xff]
        %v814 = vld [vmem:[%s2] sm:$0xff]
        %v815 = vld [vmem:[%s2 + $0x8] sm:$0xff]
        %v816 = vld [vmem:[%s2 + $0x10] sm:$0xff]
        %v817 = vld [vmem:[%s2 + $0x18] sm:$0xff]
        %v818 = vpack.c.bf16 %v809, %v809
        %v819 = vld [vmem:[%s5] sm:$0xf]
        %v820 = vld [vmem:[%s5 + $0x4] sm:$0xf]
        %v821 = vld [vmem:[%s5 + $0x8] sm:$0xf]
        %v822 = vld [vmem:[%s5 + $0xc] sm:$0xf]
        %v823 = vld [vmem:[%s6] sm:$0x1]
        %v825 = vlaneseq
        %v826 = vshrl.u32 %v825, 7
        %v827 = vsub.s32 0, %v826
        %v828 = vrot.slane %v823, %v827
        %v834 = vunpack.c.l.b16 %v819
        %v835 = vunpack.c.l.b16 %v820
        %v836 = vunpack.c.l.b16 %v821
        %v837 = vunpack.c.l.b16 %v822
        %v838 = vpack.c.b16 %v835, %v834
        %v839 = vpack.c.b16 %v837, %v836
        %v843 = vsel %vm781, %v818, 0
        %845 = vmatprep.subr.bf16.mxu0 0
        %846 = vmatpush1.bf16.msra.mxu0 0
        %847 = vmatprep.subr.bf16.mxu0 0
        %848 = vmatpush1.bf16.msra.mxu0 0
        %849 = vmatprep.subr.bf16.mxu0 0
        %850 = vmatpush1.bf16.msra.mxu0 0
        %851 = vmatprep.subr.bf16.mxu0 0
        %852 = vmatpush1.bf16.msra.mxu0 0
        %853 = vmatprep.subr.bf16.mxu0 0
        %854 = vmatpush1.bf16.msra.mxu0 0
        %855 = vmatprep.subr.bf16.mxu0 0
        %856 = vmatpush1.bf16.msra.mxu0 0
        %857 = vmatprep.subr.bf16.mxu0 0
        %858 = vmatpush1.bf16.msra.mxu0 %v839
        %859 = vmatprep.subr.bf16.mxu0 0
        %860 = vmatpush1.bf16.msra.mxu0 %v838
        %861 = vmatprep.subr.bf16.mxu0 0
        %862 = vmatpush2.bf16.msra.mxu0 0
        %863 = vmatprep.subr.bf16.mxu0 0
        %864 = vmatpush2.bf16.msra.mxu0 0
        %865 = vmatprep.subr.bf16.mxu0 0
        %866 = vmatpush2.bf16.msra.mxu0 0
        %867 = vmatprep.subr.bf16.mxu0 0
        %868 = vmatpush2.bf16.msra.mxu0 0
        %869 = vmatprep.subr.bf16.mxu0 0
        %870 = vmatpush2.bf16.msra.mxu0 0
        %871 = vmatprep.subr.bf16.mxu0 0
        %872 = vmatpush2.bf16.msra.mxu0 0
        %873 = vmatprep.subr.bf16.mxu0 0
        %874 = vmatpush2.bf16.msra.mxu0 0
        %875 = vmatprep.subr.bf16.mxu0 0
        %876 = vmatpush2.bf16.msra.mxu0 0
        %877 = vmatprep.mubr.bf16.mxu0 0
        %878 = vmatmul.mubr.bf16.gmra.mxu0 %v843
        %v879 = vpop.f32.mrf.mxu0
        %v880 = vadd.f32 %v828, %v879
        %v881 = vpop.f32.mrf.mxu0
        %v882 = vpop.f32.mrf.mxu0
        %v883 = vpop.f32.mrf.mxu0
        %884 = vdwg.mxu0
        %v885 = vmul.f32 %v880, %v814
        %v886 = vmul.f32 %v880, %v815
        %v887 = vmul.f32 %v880, %v816
        %v888 = vmul.f32 %v880, %v817
        %v889 = vpack.c.bf16 %v886, %v885
        %v890 = vpack.c.bf16 %v888, %v887
        %v891 = vpack.c.bf16 %v880, %v880
        %893 = vrot.lane.b32.xlu0 %v891, 96
        %v894 = vpop.permute.xlu0 %893
        %v896 = vsel %vm781, %v889, 0
        %v899 = vsel %vm781, %v890, 0
        %v902 = vsel %vm781, %v894, 0
        %904 = vmatprep.subr.bf16.mxu0 0
        %905 = vmatpush1.bf16.xpose.msra.mxu0 0
        %906 = vmatprep.subr.bf16.mxu0 0
        %907 = vmatpush1.bf16.xpose.msra.mxu0 0
        %908 = vmatprep.subr.bf16.mxu0 0
        %909 = vmatpush1.bf16.xpose.msra.mxu0 0
        %910 = vmatprep.subr.bf16.mxu0 0
        %911 = vmatpush1.bf16.xpose.msra.mxu0 0
        %912 = vmatprep.subr.bf16.mxu0 0
        %913 = vmatpush1.bf16.xpose.msra.mxu0 0
        %914 = vmatprep.subr.bf16.mxu0 0
        %915 = vmatpush1.bf16.xpose.msra.mxu0 0
        %916 = vmatprep.subr.bf16.mxu0 0
        %917 = vmatpush1.bf16.xpose.msra.mxu0 0
        %918 = vmatprep.subr.bf16.mxu0 0
        %919 = vmatpush1.bf16.xpose.msra.mxu0 %v902
        %920 = vmatprep.subr.bf16.mxu0 0
        %921 = vmatpush2.bf16.xpose.msra.mxu0 0
        %922 = vmatprep.subr.bf16.mxu0 0
        %923 = vmatpush2.bf16.xpose.msra.mxu0 0
        %924 = vmatprep.subr.bf16.mxu0 0
        %925 = vmatpush2.bf16.xpose.msra.mxu0 0
        %926 = vmatprep.subr.bf16.mxu0 0
        %927 = vmatpush2.bf16.xpose.msra.mxu0 0
        %928 = vmatprep.subr.bf16.mxu0 0
        %929 = vmatpush2.bf16.xpose.msra.mxu0 0
        %930 = vmatprep.subr.bf16.mxu0 0
        %931 = vmatpush2.bf16.xpose.msra.mxu0 0
        %932 = vmatprep.subr.bf16.mxu0 0
        %933 = vmatpush2.bf16.xpose.msra.mxu0 0
        %934 = vmatprep.subr.bf16.mxu0 0
        %935 = vmatpush2.bf16.xpose.msra.mxu0 0
        %936 = vmatprep.mubr.bf16.mxu0 0
        %937 = vmatmul.mubr.bf16.gmra.mxu0 %v896
        %v938 = vpop.f32.mrf.mxu0
        %v939 = vadd.f32 %v810, %v938
        %v940 = vpop.f32.mrf.mxu0
        %v941 = vpop.f32.mrf.mxu0
        %v942 = vadd.f32 %v811, %v941
        %v943 = vpop.f32.mrf.mxu0
        %944 = vmatprep.mubr.bf16.mxu0 0
        %945 = vmatmul.mubr.bf16.gmra.mxu0 %v899
        %v946 = vpop.f32.mrf.mxu0
        %v947 = vadd.f32 %v812, %v946
        %v948 = vpop.f32.mrf.mxu0
        %v949 = vpop.f32.mrf.mxu0
        %v950 = vadd.f32 %v813, %v949
        %v951 = vpop.f32.mrf.mxu0
        %952 = vdwg.mxu0
        %vm953 = vcmask 64512
        %v954 = vsel %vm953, %v939, -inf
        %955 = vmax.xlane.f32.xlu0 %v954
        %v956 = vpop.xlane.xlu0 %955
        %v957 = vsel %vm953, %v942, -inf
        %958 = vmax.xlane.f32.xlu0 %v957
        %v959 = vpop.xlane.xlu0 %958
        %v960 = vsel %vm953, %v947, -inf
        %961 = vmax.xlane.f32.xlu0 %v960
        %v962 = vpop.xlane.xlu0 %961
        %v963 = vsel %vm953, %v950, -inf
        %964 = vmax.xlane.f32.xlu0 %v963
        %v965 = vpop.xlane.xlu0 %964
        %v966 = vsub.f32 %v939, %v956
        %v967 = vsub.f32 %v942, %v959
        %v968 = vsub.f32 %v947, %v962
        %v969 = vsub.f32 %v950, %v965
        %v970 = vmul.f32 %v966, 1.442695
        %v971 = vpow.pop %v970
        %v972 = vmul.f32 %v967, 1.442695
        %v973 = vpow.pop %v972
        %v974 = vmul.f32 %v968, 1.442695
        %v975 = vpow.pop %v974
        %v976 = vmul.f32 %v969, 1.442695
        %v977 = vpow.pop %v976
        %v978 = vsel %vm953, %v971, 0.0
        %979 = vadd.xlane.f32.xlu0 %v978
        %v980 = vpop.xlane.xlu0 %979
        %v981 = vsel %vm953, %v973, 0.0
        %982 = vadd.xlane.f32.xlu0 %v981
        %v983 = vpop.xlane.xlu0 %982
        %v984 = vsel %vm953, %v975, 0.0
        %985 = vadd.xlane.f32.xlu0 %v984
        %v986 = vpop.xlane.xlu0 %985
        %v987 = vsel %vm953, %v977, 0.0
        %988 = vadd.xlane.f32.xlu0 %v987
        %v989 = vpop.xlane.xlu0 %988
        %v990 = vrcp.pop %v980
        %v991 = vrcp.pop %v983
        %v992 = vrcp.pop %v986
        %v993 = vrcp.pop %v989
        %v994 = vmul.f32 %v971, %v990
        %v995 = vmul.f32 %v973, %v991
        %v996 = vmul.f32 %v975, %v992
        %v997 = vmul.f32 %v977, %v993
        %v998 = vpack.c.bf16 %v995, %v994
        %v999 = vpack.c.bf16 %v997, %v996
        %1000 = vrot.lane.b32.xlu0 %v891, 64
        %v1001 = vpop.permute.xlu0 %1000
        %v1003 = vsel %vm953, %v998, 0
        %v1006 = vsel %vm953, %v999, 0
        %vm1008 = vcmask 1043456
        %v1010 = vsel %vm1008, %v1001, 0
        %1012 = vmatprep.subr.bf16.mxu0 0
        %1013 = vmatpush1.bf16.msra.mxu0 0
        %1014 = vmatprep.subr.bf16.mxu0 0
        %1015 = vmatpush1.bf16.msra.mxu0 0
        %1016 = vmatprep.subr.bf16.mxu0 0
        %1017 = vmatpush1.bf16.msra.mxu0 0
        %1018 = vmatprep.subr.bf16.mxu0 0
        %1019 = vmatpush1.bf16.msra.mxu0 0
        %1020 = vmatprep.subr.bf16.mxu0 0
        %1021 = vmatpush1.bf16.msra.mxu0 0
        %1022 = vmatprep.subr.bf16.mxu0 0
        %1023 = vmatpush1.bf16.msra.mxu0 0
        %1024 = vmatprep.subr.bf16.mxu0 0
        %1025 = vmatpush1.bf16.msra.mxu0 0
        %1026 = vmatprep.subr.bf16.mxu0 0
        %1027 = vmatpush1.bf16.msra.mxu0 %v1010
        %1028 = vmatprep.subr.bf16.mxu0 0
        %1029 = vmatpush2.bf16.msra.mxu0 0
        %1030 = vmatprep.subr.bf16.mxu0 0
        %1031 = vmatpush2.bf16.msra.mxu0 0
        %1032 = vmatprep.subr.bf16.mxu0 0
        %1033 = vmatpush2.bf16.msra.mxu0 0
        %1034 = vmatprep.subr.bf16.mxu0 0
        %1035 = vmatpush2.bf16.msra.mxu0 0
        %1036 = vmatprep.subr.bf16.mxu0 0
        %1037 = vmatpush2.bf16.msra.mxu0 0
        %1038 = vmatprep.subr.bf16.mxu0 0
        %1039 = vmatpush2.bf16.msra.mxu0 0
        %1040 = vmatprep.subr.bf16.mxu0 0
        %1041 = vmatpush2.bf16.msra.mxu0 0
        %1042 = vmatprep.subr.bf16.mxu0 0
        %1043 = vmatpush2.bf16.msra.mxu0 0
        %1044 = vmatprep.mubr.bf16.mxu0 0
        %1045 = vmatmul.mubr.bf16.gmra.mxu0 %v1003
        %v1046 = vpop.f32.mrf.mxu0
        %v1047 = vadd.f32 0.0, %v1046
        %v1048 = vpop.f32.mrf.mxu0
        %v1049 = vpop.f32.mrf.mxu0
        %v1050 = vadd.f32 0.0, %v1049
        %v1051 = vpop.f32.mrf.mxu0
        %1052 = vmatprep.mubr.bf16.mxu0 0
        %1053 = vmatmul.mubr.bf16.gmra.mxu0 %v1006
        %v1054 = vpop.f32.mrf.mxu0
        %v1055 = vadd.f32 0.0, %v1054
        %v1056 = vpop.f32.mrf.mxu0
        %v1057 = vpop.f32.mrf.mxu0
        %v1058 = vadd.f32 0.0, %v1057
        %v1059 = vpop.f32.mrf.mxu0
        %1060 = vdwg.mxu0
        %v1061 = vmul.f32 %v1047, %v814
        %v1062 = vmul.f32 %v1050, %v815
        %v1063 = vmul.f32 %v1055, %v816
        %v1064 = vmul.f32 %v1058, %v817
        %v1065 = vadd.f32 %v1061, %v1062
        %v1066 = vadd.f32 %v1065, %v1063
        %v1067 = vadd.f32 %v1066, %v1064
        %v1068 = vpack.c.bf16 %v1067, %v1067
        %v1069 = vld [vmem:[%s7] sm:$0xf]
        %v1070 = vld [vmem:[%s7 + $0x4] sm:$0xf]
        %v1071 = vld [vmem:[%s7 + $0x8] sm:$0xf]
        %v1072 = vld [vmem:[%s7 + $0xc] sm:$0xf]
        %v1073 = vld [vmem:[%s8] sm:$0x1]
        %v1075 = vlaneseq
        %v1076 = vshrl.u32 %v1075, 7
        %v1077 = vsub.s32 0, %v1076
        %v1078 = vrot.slane %v1073, %v1077
        %v1084 = vunpack.c.l.b16 %v1069
        %v1085 = vunpack.c.l.b16 %v1070
        %v1086 = vunpack.c.l.b16 %v1071
        %v1087 = vunpack.c.l.b16 %v1072
        %v1088 = vpack.c.b16 %v1085, %v1084
        %v1089 = vpack.c.b16 %v1087, %v1086
        %v1093 = vsel %vm781, %v1068, 0
        %1095 = vmatprep.subr.bf16.mxu0 0
        %1096 = vmatpush1.bf16.msra.mxu0 0
        %1097 = vmatprep.subr.bf16.mxu0 0
        %1098 = vmatpush1.bf16.msra.mxu0 0
        %1099 = vmatprep.subr.bf16.mxu0 0
        %1100 = vmatpush1.bf16.msra.mxu0 0
        %1101 = vmatprep.subr.bf16.mxu0 0
        %1102 = vmatpush1.bf16.msra.mxu0 0
        %1103 = vmatprep.subr.bf16.mxu0 0
        %1104 = vmatpush1.bf16.msra.mxu0 0
        %1105 = vmatprep.subr.bf16.mxu0 0
        %1106 = vmatpush1.bf16.msra.mxu0 0
        %1107 = vmatprep.subr.bf16.mxu0 0
        %1108 = vmatpush1.bf16.msra.mxu0 %v1089
        %1109 = vmatprep.subr.bf16.mxu0 0
        %1110 = vmatpush1.bf16.msra.mxu0 %v1088
        %1111 = vmatprep.subr.bf16.mxu0 0
        %1112 = vmatpush2.bf16.msra.mxu0 0
        %1113 = vmatprep.subr.bf16.mxu0 0
        %1114 = vmatpush2.bf16.msra.mxu0 0
        %1115 = vmatprep.subr.bf16.mxu0 0
        %1116 = vmatpush2.bf16.msra.mxu0 0
        %1117 = vmatprep.subr.bf16.mxu0 0
        %1118 = vmatpush2.bf16.msra.mxu0 0
        %1119 = vmatprep.subr.bf16.mxu0 0
        %1120 = vmatpush2.bf16.msra.mxu0 0
        %1121 = vmatprep.subr.bf16.mxu0 0
        %1122 = vmatpush2.bf16.msra.mxu0 0
        %1123 = vmatprep.subr.bf16.mxu0 0
        %1124 = vmatpush2.bf16.msra.mxu0 0
        %1125 = vmatprep.subr.bf16.mxu0 0
        %1126 = vmatpush2.bf16.msra.mxu0 0
        %1127 = vmatprep.mubr.bf16.mxu0 0
        %1128 = vmatmul.mubr.bf16.gmra.mxu0 %v1093
        %v1129 = vpop.f32.mrf.mxu0
        %v1130 = vadd.f32 %v1078, %v1129
        %v1131 = vpop.f32.mrf.mxu0
        %v1132 = vpop.f32.mrf.mxu0
        %v1133 = vpop.f32.mrf.mxu0
        %1134 = vdwg.mxu0
        %v1135 = vadd.f32 %v809, %v1130
        %v1136 = vld [vmem:[%s9] sm:$0x1]
        %v1137 = vld [vmem:[%s10] sm:$0x1]
        %v1138 = vsel %vm781, %v1135, 0.0
        %1139 = vadd.xlane.f32.xlu0 %v1138
        %v1140 = vpop.xlane.xlu0 %1139
        %v1141 = vmul.f32 %v1140, %v785
        %v1142 = vsub.f32 %v1135, %v1141
        %v1143 = vmul.f32 %v1142, %v1142
        %v1144 = vsel %vm781, %v1143, 0.0
        %1145 = vadd.xlane.f32.xlu0 %v1144
        %v1146 = vpop.xlane.xlu0 %1145
        %v1147 = vmul.f32 %v1146, %v785
        %v1148 = vadd.f32 %v1147, 1e-12
        %v1149 = vrsqrt.pop %v1148
        %v1150 = vmul.f32 %v1142, %v1149
        %v1152 = vlaneseq
        %v1153 = vshrl.u32 %v1152, 7
        %v1154 = vsub.s32 0, %v1153
        %v1155 = vrot.slane %v1136, %v1154
        %v1157 = vmul.f32 %v1150, %v1155
        %v1159 = vlaneseq
        %v1160 = vshrl.u32 %v1159, 7
        %v1161 = vsub.s32 0, %v1160
        %v1162 = vrot.slane %v1137, %v1161
        %v1164 = vadd.f32 %v1157, %v1162
        %v1165 = vpack.c.bf16 %v1164, %v1164
        %v1166 = vld [vmem:[%s11] sm:$0xf]
        %v1167 = vld [vmem:[%s11 + $0x4] sm:$0xf]
        %v1168 = vld [vmem:[%s11 + $0x8] sm:$0xf]
        %v1169 = vld [vmem:[%s11 + $0xc] sm:$0xf]
        %v1170 = vld [vmem:[%s12] sm:$0x1]
        %v1172 = vlaneseq
        %v1173 = vshrl.u32 %v1172, 7
        %v1174 = vsub.s32 0, %v1173
        %v1175 = vrot.slane %v1170, %v1174
        %v1181 = vunpack.c.l.b16 %v1166
        %v1182 = vunpack.c.l.b16 %v1167
        %v1183 = vunpack.c.l.b16 %v1168
        %v1184 = vunpack.c.l.b16 %v1169
        %v1185 = vpack.c.b16 %v1182, %v1181
        %v1186 = vpack.c.b16 %v1184, %v1183
        %v1190 = vsel %vm781, %v1165, 0
        %1192 = vmatprep.subr.bf16.mxu0 0
        %1193 = vmatpush1.bf16.msra.mxu0 0
        %1194 = vmatprep.subr.bf16.mxu0 0
        %1195 = vmatpush1.bf16.msra.mxu0 0
        %1196 = vmatprep.subr.bf16.mxu0 0
        %1197 = vmatpush1.bf16.msra.mxu0 0
        %1198 = vmatprep.subr.bf16.mxu0 0
        %1199 = vmatpush1.bf16.msra.mxu0 0
        %1200 = vmatprep.subr.bf16.mxu0 0
        %1201 = vmatpush1.bf16.msra.mxu0 0
        %1202 = vmatprep.subr.bf16.mxu0 0
        %1203 = vmatpush1.bf16.msra.mxu0 0
        %1204 = vmatprep.subr.bf16.mxu0 0
        %1205 = vmatpush1.bf16.msra.mxu0 %v1186
        %1206 = vmatprep.subr.bf16.mxu0 0
        %1207 = vmatpush1.bf16.msra.mxu0 %v1185
        %1208 = vmatprep.subr.bf16.mxu0 0
        %1209 = vmatpush2.bf16.msra.mxu0 0
        %1210 = vmatprep.subr.bf16.mxu0 0
        %1211 = vmatpush2.bf16.msra.mxu0 0
        %1212 = vmatprep.subr.bf16.mxu0 0
        %1213 = vmatpush2.bf16.msra.mxu0 0
        %1214 = vmatprep.subr.bf16.mxu0 0
        %1215 = vmatpush2.bf16.msra.mxu0 0
        %1216 = vmatprep.subr.bf16.mxu0 0
        %1217 = vmatpush2.bf16.msra.mxu0 0
        %1218 = vmatprep.subr.bf16.mxu0 0
        %1219 = vmatpush2.bf16.msra.mxu0 0
        %1220 = vmatprep.subr.bf16.mxu0 0
        %1221 = vmatpush2.bf16.msra.mxu0 0
        %1222 = vmatprep.subr.bf16.mxu0 0
        %1223 = vmatpush2.bf16.msra.mxu0 0
        %1224 = vmatprep.mubr.bf16.mxu0 0
        %1225 = vmatmul.mubr.bf16.gmra.mxu0 %v1190
        %v1226 = vpop.f32.mrf.mxu0
        %v1227 = vadd.f32 %v1175, %v1226
        %v1228 = vpop.f32.mrf.mxu0
        %v1229 = vpop.f32.mrf.mxu0
        %v1230 = vpop.f32.mrf.mxu0
        %1231 = vdwg.mxu0
        %v1232 = vmul.f32 %v1227, %v1227
        %v1233 = vmul.f32 %v1227, %v1232
        %v1234 = vmul.f32 %v1233, 0.044715
        %v1235 = vadd.f32 %v1227, %v1234
        %v1236 = vmul.f32 %v1235, 0.7978846
        %v1237 = vtanh.pop %v1236
        %v1238 = vadd.f32 %v1237, 1.0
        %v1239 = vmul.f32 %v1238, 0.5
        %v1240 = vmul.f32 %v1227, %v1239
        %v1241 = vpack.c.bf16 %v1240, %v1240
        %v1242 = vld [vmem:[%s13] sm:$0xf]
        %v1243 = vld [vmem:[%s13 + $0x4] sm:$0xf]
        %v1244 = vld [vmem:[%s13 + $0x8] sm:$0xf]
        %v1245 = vld [vmem:[%s13 + $0xc] sm:$0xf]
        %v1246 = vld [vmem:[%s13 + $0x10] sm:$0xf]
        %v1247 = vld [vmem:[%s13 + $0x14] sm:$0xf]
        %v1248 = vld [vmem:[%s13 + $0x18] sm:$0xf]
        %v1249 = vld [vmem:[%s13 + $0x1c] sm:$0xf]
        %v1250 = vld [vmem:[%s13 + $0x20] sm:$0xf]
        %v1251 = vld [vmem:[%s13 + $0x24] sm:$0xf]
        %v1252 = vld [vmem:[%s13 + $0x28] sm:$0xf]
        %v1253 = vld [vmem:[%s13 + $0x2c] sm:$0xf]
        %v1254 = vld [vmem:[%s13 + $0x30] sm:$0xf]
        %v1255 = vld [vmem:[%s13 + $0x34] sm:$0xf]
        %v1256 = vld [vmem:[%s13 + $0x38] sm:$0xf]
        %v1257 = vld [vmem:[%s13 + $0x3c] sm:$0xf]
        %v1258 = vld [vmem:[%s14] sm:$0x1]
        %v1260 = vlaneseq
        %v1261 = vshrl.u32 %v1260, 7
        %v1262 = vsub.s32 0, %v1261
        %v1263 = vrot.slane %v1258, %v1262
        %v1281 = vunpack.c.l.b16 %v1242
        %v1282 = vunpack.c.l.b16 %v1243
        %v1283 = vunpack.c.l.b16 %v1244
        %v1284 = vunpack.c.l.b16 %v1245
        %v1285 = vunpack.c.l.b16 %v1246
        %v1286 = vunpack.c.l.b16 %v1247
        %v1287 = vunpack.c.l.b16 %v1248
        %v1288 = vunpack.c.l.b16 %v1249
        %v1289 = vunpack.c.l.b16 %v1250
        %v1290 = vunpack.c.l.b16 %v1251
        %v1291 = vunpack.c.l.b16 %v1252
        %v1292 = vunpack.c.l.b16 %v1253
        %v1293 = vunpack.c.l.b16 %v1254
        %v1294 = vunpack.c.l.b16 %v1255
        %v1295 = vunpack.c.l.b16 %v1256
        %v1296 = vunpack.c.l.b16 %v1257
        %v1297 = vpack.c.b16 %v1282, %v1281
        %v1298 = vpack.c.b16 %v1284, %v1283
        %v1299 = vpack.c.b16 %v1286, %v1285
        %v1300 = vpack.c.b16 %v1288, %v1287
        %v1301 = vpack.c.b16 %v1290, %v1289
        %v1302 = vpack.c.b16 %v1292, %v1291
        %v1303 = vpack.c.b16 %v1294, %v1293
        %v1304 = vpack.c.b16 %v1296, %v1295
        %1313 = vmatprep.subr.bf16.mxu0 0
        %1314 = vmatpush1.bf16.msra.mxu0 %v1304
        %1315 = vmatprep.subr.bf16.mxu0 0
        %1316 = vmatpush1.bf16.msra.mxu0 %v1303
        %1317 = vmatprep.subr.bf16.mxu0 0
        %1318 = vmatpush1.bf16.msra.mxu0 %v1302
        %1319 = vmatprep.subr.bf16.mxu0 0
        %1320 = vmatpush1.bf16.msra.mxu0 %v1301
        %1321 = vmatprep.subr.bf16.mxu0 0
        %1322 = vmatpush1.bf16.msra.mxu0 %v1300
        %1323 = vmatprep.subr.bf16.mxu0 0
        %1324 = vmatpush1.bf16.msra.mxu0 %v1299
        %1325 = vmatprep.subr.bf16.mxu0 0
        %1326 = vmatpush1.bf16.msra.mxu0 %v1298
        %1327 = vmatprep.subr.bf16.mxu0 0
        %1328 = vmatpush1.bf16.msra.mxu0 %v1297
        %1329 = vmatprep.subr.bf16.mxu0 0
        %1330 = vmatpush2.bf16.msra.mxu0 0
        %1331 = vmatprep.subr.bf16.mxu0 0
        %1332 = vmatpush2.bf16.msra.mxu0 0
        %1333 = vmatprep.subr.bf16.mxu0 0
        %1334 = vmatpush2.bf16.msra.mxu0 0
        %1335 = vmatprep.subr.bf16.mxu0 0
        %1336 = vmatpush2.bf16.msra.mxu0 0
        %1337 = vmatprep.subr.bf16.mxu0 0
        %1338 = vmatpush2.bf16.msra.mxu0 0
        %1339 = vmatprep.subr.bf16.mxu0 0
        %1340 = vmatpush2.bf16.msra.mxu0 0
        %1341 = vmatprep.subr.bf16.mxu0 0
        %1342 = vmatpush2.bf16.msra.mxu0 0
        %1343 = vmatprep.subr.bf16.mxu0 0
        %1344 = vmatpush2.bf16.msra.mxu0 0
        %1345 = vmatprep.mubr.bf16.mxu0 0
        %1346 = vmatmul.mubr.bf16.gmra.mxu0 %v1241
        %v1347 = vpop.f32.mrf.mxu0
        %v1348 = vadd.f32 %v1263, %v1347
        %v1349 = vpop.f32.mrf.mxu0
        %v1350 = vpop.f32.mrf.mxu0
        %v1351 = vpop.f32.mrf.mxu0
        %1352 = vdwg.mxu0
        %v1353 = vadd.f32 %v1164, %v1348
        %v1354 = vld [vmem:[%s15] sm:$0x1]
        %v1355 = vld [vmem:[%s16] sm:$0x1]
        %v1356 = vsel %vm781, %v1353, 0.0
        %1357 = vadd.xlane.f32.xlu0 %v1356
        %v1358 = vpop.xlane.xlu0 %1357
        %v1359 = vmul.f32 %v1358, %v785
        %v1360 = vsub.f32 %v1353, %v1359
        %v1361 = vmul.f32 %v1360, %v1360
        %v1362 = vsel %vm781, %v1361, 0.0
        %1363 = vadd.xlane.f32.xlu0 %v1362
        %v1364 = vpop.xlane.xlu0 %1363
        %v1365 = vmul.f32 %v1364, %v785
        %v1366 = vadd.f32 %v1365, 1e-12
        %v1367 = vrsqrt.pop %v1366
        %v1368 = vmul.f32 %v1360, %v1367
        %v1370 = vlaneseq
        %v1371 = vshrl.u32 %v1370, 7
        %v1372 = vsub.s32 0, %v1371
        %v1373 = vrot.slane %v1354, %v1372
        %v1375 = vmul.f32 %v1368, %v1373
        %v1377 = vlaneseq
        %v1378 = vshrl.u32 %v1377, 7
        %v1379 = vsub.s32 0, %v1378
        %v1380 = vrot.slane %v1355, %v1379
        %v1382 = vadd.f32 %v1375, %v1380
        %v1383 = vpack.c.bf16 %v1382, %v1382
        %s1384 = scalar_lea.vmem %s5, 16
        %v1385 = vld [vmem:[%s1384] sm:$0xf]
        %v1386 = vld [vmem:[%s1384 + $0x4] sm:$0xf]
        %v1387 = vld [vmem:[%s1384 + $0x8] sm:$0xf]
        %v1388 = vld [vmem:[%s1384 + $0xc] sm:$0xf]
        %s1389 = scalar_lea.vmem %s6, 1
        %v1390 = vld [vmem:[%s1389] sm:$0x1]
        %v1392 = vlaneseq
        %v1393 = vshrl.u32 %v1392, 7
        %v1394 = vsub.s32 0, %v1393
        %v1395 = vrot.slane %v1390, %v1394
        %v1401 = vunpack.c.l.b16 %v1385
        %v1402 = vunpack.c.l.b16 %v1386
        %v1403 = vunpack.c.l.b16 %v1387
        %v1404 = vunpack.c.l.b16 %v1388
        %v1405 = vpack.c.b16 %v1402, %v1401
        %v1406 = vpack.c.b16 %v1404, %v1403
        %v1410 = vsel %vm781, %v1383, 0
        %1412 = vmatprep.subr.bf16.mxu0 0
        %1413 = vmatpush1.bf16.msra.mxu0 0
        %1414 = vmatprep.subr.bf16.mxu0 0
        %1415 = vmatpush1.bf16.msra.mxu0 0
        %1416 = vmatprep.subr.bf16.mxu0 0
        %1417 = vmatpush1.bf16.msra.mxu0 0
        %1418 = vmatprep.subr.bf16.mxu0 0
        %1419 = vmatpush1.bf16.msra.mxu0 0
        %1420 = vmatprep.subr.bf16.mxu0 0
        %1421 = vmatpush1.bf16.msra.mxu0 0
        %1422 = vmatprep.subr.bf16.mxu0 0
        %1423 = vmatpush1.bf16.msra.mxu0 0
        %1424 = vmatprep.subr.bf16.mxu0 0
        %1425 = vmatpush1.bf16.msra.mxu0 %v1406
        %1426 = vmatprep.subr.bf16.mxu0 0
        %1427 = vmatpush1.bf16.msra.mxu0 %v1405
        %1428 = vmatprep.subr.bf16.mxu0 0
        %1429 = vmatpush2.bf16.msra.mxu0 0
        %1430 = vmatprep.subr.bf16.mxu0 0
        %1431 = vmatpush2.bf16.msra.mxu0 0
        %1432 = vmatprep.subr.bf16.mxu0 0
        %1433 = vmatpush2.bf16.msra.mxu0 0
        %1434 = vmatprep.subr.bf16.mxu0 0
        %1435 = vmatpush2.bf16.msra.mxu0 0
        %1436 = vmatprep.subr.bf16.mxu0 0
        %1437 = vmatpush2.bf16.msra.mxu0 0
        %1438 = vmatprep.subr.bf16.mxu0 0
        %1439 = vmatpush2.bf16.msra.mxu0 0
        %1440 = vmatprep.subr.bf16.mxu0 0
        %1441 = vmatpush2.bf16.msra.mxu0 0
        %1442 = vmatprep.subr.bf16.mxu0 0
        %1443 = vmatpush2.bf16.msra.mxu0 0
        %1444 = vmatprep.mubr.bf16.mxu0 0
        %1445 = vmatmul.mubr.bf16.gmra.mxu0 %v1410
        %v1446 = vpop.f32.mrf.mxu0
        %v1447 = vadd.f32 %v1395, %v1446
        %v1448 = vpop.f32.mrf.mxu0
        %v1449 = vpop.f32.mrf.mxu0
        %v1450 = vpop.f32.mrf.mxu0
        %1451 = vdwg.mxu0
        %v1452 = vmul.f32 %v1447, %v814
        %v1453 = vmul.f32 %v1447, %v815
        %v1454 = vmul.f32 %v1447, %v816
        %v1455 = vmul.f32 %v1447, %v817
        %v1456 = vpack.c.bf16 %v1453, %v1452
        %v1457 = vpack.c.bf16 %v1455, %v1454
        %v1458 = vpack.c.bf16 %v1447, %v1447
        %1460 = vrot.lane.b32.xlu0 %v1458, 96
        %v1461 = vpop.permute.xlu0 %1460
        %v1463 = vsel %vm781, %v1456, 0
        %v1466 = vsel %vm781, %v1457, 0
        %v1469 = vsel %vm781, %v1461, 0
        %1471 = vmatprep.subr.bf16.mxu0 0
        %1472 = vmatpush1.bf16.xpose.msra.mxu0 0
        %1473 = vmatprep.subr.bf16.mxu0 0
        %1474 = vmatpush1.bf16.xpose.msra.mxu0 0
        %1475 = vmatprep.subr.bf16.mxu0 0
        %1476 = vmatpush1.bf16.xpose.msra.mxu0 0
        %1477 = vmatprep.subr.bf16.mxu0 0
        %1478 = vmatpush1.bf16.xpose.msra.mxu0 0
        %1479 = vmatprep.subr.bf16.mxu0 0
        %1480 = vmatpush1.bf16.xpose.msra.mxu0 0
        %1481 = vmatprep.subr.bf16.mxu0 0
        %1482 = vmatpush1.bf16.xpose.msra.mxu0 0
        %1483 = vmatprep.subr.bf16.mxu0 0
        %1484 = vmatpush1.bf16.xpose.msra.mxu0 0
        %1485 = vmatprep.subr.bf16.mxu0 0
        %1486 = vmatpush1.bf16.xpose.msra.mxu0 %v1469
        %1487 = vmatprep.subr.bf16.mxu0 0
        %1488 = vmatpush2.bf16.xpose.msra.mxu0 0
        %1489 = vmatprep.subr.bf16.mxu0 0
        %1490 = vmatpush2.bf16.xpose.msra.mxu0 0
        %1491 = vmatprep.subr.bf16.mxu0 0
        %1492 = vmatpush2.bf16.xpose.msra.mxu0 0
        %1493 = vmatprep.subr.bf16.mxu0 0
        %1494 = vmatpush2.bf16.xpose.msra.mxu0 0
        %1495 = vmatprep.subr.bf16.mxu0 0
        %1496 = vmatpush2.bf16.xpose.msra.mxu0 0
        %1497 = vmatprep.subr.bf16.mxu0 0
        %1498 = vmatpush2.bf16.xpose.msra.mxu0 0
        %1499 = vmatprep.subr.bf16.mxu0 0
        %1500 = vmatpush2.bf16.xpose.msra.mxu0 0
        %1501 = vmatprep.subr.bf16.mxu0 0
        %1502 = vmatpush2.bf16.xpose.msra.mxu0 0
        %1503 = vmatprep.mubr.bf16.mxu0 0
        %1504 = vmatmul.mubr.bf16.gmra.mxu0 %v1463
        %v1505 = vpop.f32.mrf.mxu0
        %v1506 = vadd.f32 %v810, %v1505
        %v1507 = vpop.f32.mrf.mxu0
        %v1508 = vpop.f32.mrf.mxu0
        %v1509 = vadd.f32 %v811, %v1508
        %v1510 = vpop.f32.mrf.mxu0
        %1511 = vmatprep.mubr.bf16.mxu0 0
        %1512 = vmatmul.mubr.bf16.gmra.mxu0 %v1466
        %v1513 = vpop.f32.mrf.mxu0
        %v1514 = vadd.f32 %v812, %v1513
        %v1515 = vpop.f32.mrf.mxu0
        %v1516 = vpop.f32.mrf.mxu0
        %v1517 = vadd.f32 %v813, %v1516
        %v1518 = vpop.f32.mrf.mxu0
        %1519 = vdwg.mxu0
        %v1520 = vsel %vm953, %v1506, -inf
        %1521 = vmax.xlane.f32.xlu0 %v1520
        %v1522 = vpop.xlane.xlu0 %1521
        %v1523 = vsel %vm953, %v1509, -inf
        %1524 = vmax.xlane.f32.xlu0 %v1523
        %v1525 = vpop.xlane.xlu0 %1524
        %v1526 = vsel %vm953, %v1514, -inf
        %1527 = vmax.xlane.f32.xlu0 %v1526
        %v1528 = vpop.xlane.xlu0 %1527
        %v1529 = vsel %vm953, %v1517, -inf
        %1530 = vmax.xlane.f32.xlu0 %v1529
        %v1531 = vpop.xlane.xlu0 %1530
        %v1532 = vsub.f32 %v1506, %v1522
        %v1533 = vsub.f32 %v1509, %v1525
        %v1534 = vsub.f32 %v1514, %v1528
        %v1535 = vsub.f32 %v1517, %v1531
        %v1536 = vmul.f32 %v1532, 1.442695
        %v1537 = vpow.pop %v1536
        %v1538 = vmul.f32 %v1533, 1.442695
        %v1539 = vpow.pop %v1538
        %v1540 = vmul.f32 %v1534, 1.442695
        %v1541 = vpow.pop %v1540
        %v1542 = vmul.f32 %v1535, 1.442695
        %v1543 = vpow.pop %v1542
        %v1544 = vsel %vm953, %v1537, 0.0
        %1545 = vadd.xlane.f32.xlu0 %v1544
        %v1546 = vpop.xlane.xlu0 %1545
        %v1547 = vsel %vm953, %v1539, 0.0
        %1548 = vadd.xlane.f32.xlu0 %v1547
        %v1549 = vpop.xlane.xlu0 %1548
        %v1550 = vsel %vm953, %v1541, 0.0
        %1551 = vadd.xlane.f32.xlu0 %v1550
        %v1552 = vpop.xlane.xlu0 %1551
        %v1553 = vsel %vm953, %v1543, 0.0
        %1554 = vadd.xlane.f32.xlu0 %v1553
        %v1555 = vpop.xlane.xlu0 %1554
        %v1556 = vrcp.pop %v1546
        %v1557 = vrcp.pop %v1549
        %v1558 = vrcp.pop %v1552
        %v1559 = vrcp.pop %v1555
        %v1560 = vmul.f32 %v1537, %v1556
        %v1561 = vmul.f32 %v1539, %v1557
        %v1562 = vmul.f32 %v1541, %v1558
        %v1563 = vmul.f32 %v1543, %v1559
        %v1564 = vpack.c.bf16 %v1561, %v1560
        %v1565 = vpack.c.bf16 %v1563, %v1562
        %1566 = vrot.lane.b32.xlu0 %v1458, 64
        %v1567 = vpop.permute.xlu0 %1566
        %v1569 = vsel %vm953, %v1564, 0
        %v1572 = vsel %vm953, %v1565, 0
        %v1575 = vsel %vm1008, %v1567, 0
        %1577 = vmatprep.subr.bf16.mxu0 0
        %1578 = vmatpush1.bf16.msra.mxu0 0
        %1579 = vmatprep.subr.bf16.mxu0 0
        %1580 = vmatpush1.bf16.msra.mxu0 0
        %1581 = vmatprep.subr.bf16.mxu0 0
        %1582 = vmatpush1.bf16.msra.mxu0 0
        %1583 = vmatprep.subr.bf16.mxu0 0
        %1584 = vmatpush1.bf16.msra.mxu0 0
        %1585 = vmatprep.subr.bf16.mxu0 0
        %1586 = vmatpush1.bf16.msra.mxu0 0
        %1587 = vmatprep.subr.bf16.mxu0 0
        %1588 = vmatpush1.bf16.msra.mxu0 0
        %1589 = vmatprep.subr.bf16.mxu0 0
        %1590 = vmatpush1.bf16.msra.mxu0 0
        %1591 = vmatprep.subr.bf16.mxu0 0
        %1592 = vmatpush1.bf16.msra.mxu0 %v1575
        %1593 = vmatprep.subr.bf16.mxu0 0
        %1594 = vmatpush2.bf16.msra.mxu0 0
        %1595 = vmatprep.subr.bf16.mxu0 0
        %1596 = vmatpush2.bf16.msra.mxu0 0
        %1597 = vmatprep.subr.bf16.mxu0 0
        %1598 = vmatpush2.bf16.msra.mxu0 0
        %1599 = vmatprep.subr.bf16.mxu0 0
        %1600 = vmatpush2.bf16.msra.mxu0 0
        %1601 = vmatprep.subr.bf16.mxu0 0
        %1602 = vmatpush2.bf16.msra.mxu0 0
        %1603 = vmatprep.subr.bf16.mxu0 0
        %1604 = vmatpush2.bf16.msra.mxu0 0
        %1605 = vmatprep.subr.bf16.mxu0 0
        %1606 = vmatpush2.bf16.msra.mxu0 0
        %1607 = vmatprep.subr.bf16.mxu0 0
        %1608 = vmatpush2.bf16.msra.mxu0 0
        %1609 = vmatprep.mubr.bf16.mxu0 0
        %1610 = vmatmul.mubr.bf16.gmra.mxu0 %v1569
        %v1611 = vpop.f32.mrf.mxu0
        %v1612 = vadd.f32 0.0, %v1611
        %v1613 = vpop.f32.mrf.mxu0
        %v1614 = vpop.f32.mrf.mxu0
        %v1615 = vadd.f32 0.0, %v1614
        %v1616 = vpop.f32.mrf.mxu0
        %1617 = vmatprep.mubr.bf16.mxu0 0
        %1618 = vmatmul.mubr.bf16.gmra.mxu0 %v1572
        %v1619 = vpop.f32.mrf.mxu0
        %v1620 = vadd.f32 0.0, %v1619
        %v1621 = vpop.f32.mrf.mxu0
        %v1622 = vpop.f32.mrf.mxu0
        %v1623 = vadd.f32 0.0, %v1622
        %v1624 = vpop.f32.mrf.mxu0
        %1625 = vdwg.mxu0
        %v1626 = vmul.f32 %v1612, %v814
        %v1627 = vmul.f32 %v1615, %v815
        %v1628 = vmul.f32 %v1620, %v816
        %v1629 = vmul.f32 %v1623, %v817
        %v1630 = vadd.f32 %v1626, %v1627
        %v1631 = vadd.f32 %v1630, %v1628
        %v1632 = vadd.f32 %v1631, %v1629
        %v1633 = vpack.c.bf16 %v1632, %v1632
        %s1634 = scalar_lea.vmem %s7, 16
        %v1635 = vld [vmem:[%s1634] sm:$0xf]
        %v1636 = vld [vmem:[%s1634 + $0x4] sm:$0xf]
        %v1637 = vld [vmem:[%s1634 + $0x8] sm:$0xf]
        %v1638 = vld [vmem:[%s1634 + $0xc] sm:$0xf]
        %s1639 = scalar_lea.vmem %s8, 1
        %v1640 = vld [vmem:[%s1639] sm:$0x1]
        %v1642 = vlaneseq
        %v1643 = vshrl.u32 %v1642, 7
        %v1644 = vsub.s32 0, %v1643
        %v1645 = vrot.slane %v1640, %v1644
        %v1651 = vunpack.c.l.b16 %v1635
        %v1652 = vunpack.c.l.b16 %v1636
        %v1653 = vunpack.c.l.b16 %v1637
        %v1654 = vunpack.c.l.b16 %v1638
        %v1655 = vpack.c.b16 %v1652, %v1651
        %v1656 = vpack.c.b16 %v1654, %v1653
        %v1660 = vsel %vm781, %v1633, 0
        %1662 = vmatprep.subr.bf16.mxu0 0
        %1663 = vmatpush1.bf16.msra.mxu0 0
        %1664 = vmatprep.subr.bf16.mxu0 0
        %1665 = vmatpush1.bf16.msra.mxu0 0
        %1666 = vmatprep.subr.bf16.mxu0 0
        %1667 = vmatpush1.bf16.msra.mxu0 0
        %1668 = vmatprep.subr.bf16.mxu0 0
        %1669 = vmatpush1.bf16.msra.mxu0 0
        %1670 = vmatprep.subr.bf16.mxu0 0
        %1671 = vmatpush1.bf16.msra.mxu0 0
        %1672 = vmatprep.subr.bf16.mxu0 0
        %1673 = vmatpush1.bf16.msra.mxu0 0
        %1674 = vmatprep.subr.bf16.mxu0 0
        %1675 = vmatpush1.bf16.msra.mxu0 %v1656
        %1676 = vmatprep.subr.bf16.mxu0 0
        %1677 = vmatpush1.bf16.msra.mxu0 %v1655
        %1678 = vmatprep.subr.bf16.mxu0 0
        %1679 = vmatpush2.bf16.msra.mxu0 0
        %1680 = vmatprep.subr.bf16.mxu0 0
        %1681 = vmatpush2.bf16.msra.mxu0 0
        %1682 = vmatprep.subr.bf16.mxu0 0
        %1683 = vmatpush2.bf16.msra.mxu0 0
        %1684 = vmatprep.subr.bf16.mxu0 0
        %1685 = vmatpush2.bf16.msra.mxu0 0
        %1686 = vmatprep.subr.bf16.mxu0 0
        %1687 = vmatpush2.bf16.msra.mxu0 0
        %1688 = vmatprep.subr.bf16.mxu0 0
        %1689 = vmatpush2.bf16.msra.mxu0 0
        %1690 = vmatprep.subr.bf16.mxu0 0
        %1691 = vmatpush2.bf16.msra.mxu0 0
        %1692 = vmatprep.subr.bf16.mxu0 0
        %1693 = vmatpush2.bf16.msra.mxu0 0
        %1694 = vmatprep.mubr.bf16.mxu0 0
        %1695 = vmatmul.mubr.bf16.gmra.mxu0 %v1660
        %v1696 = vpop.f32.mrf.mxu0
        %v1697 = vadd.f32 %v1645, %v1696
        %v1698 = vpop.f32.mrf.mxu0
        %v1699 = vpop.f32.mrf.mxu0
        %v1700 = vpop.f32.mrf.mxu0
        %1701 = vdwg.mxu0
        %v1702 = vadd.f32 %v1382, %v1697
        %s1703 = scalar_lea.vmem %s9, 1
        %v1704 = vld [vmem:[%s1703] sm:$0x1]
        %s1705 = scalar_lea.vmem %s10, 1
        %v1706 = vld [vmem:[%s1705] sm:$0x1]
        %v1707 = vsel %vm781, %v1702, 0.0
        %1708 = vadd.xlane.f32.xlu0 %v1707
        %v1709 = vpop.xlane.xlu0 %1708
        %v1710 = vmul.f32 %v1709, %v785
        %v1711 = vsub.f32 %v1702, %v1710
        %v1712 = vmul.f32 %v1711, %v1711
        %v1713 = vsel %vm781, %v1712, 0.0
        %1714 = vadd.xlane.f32.xlu0 %v1713
        %v1715 = vpop.xlane.xlu0 %1714
        %v1716 = vmul.f32 %v1715, %v785
        %v1717 = vadd.f32 %v1716, 1e-12
        %v1718 = vrsqrt.pop %v1717
        %v1719 = vmul.f32 %v1711, %v1718
        %v1721 = vlaneseq
        %v1722 = vshrl.u32 %v1721, 7
        %v1723 = vsub.s32 0, %v1722
        %v1724 = vrot.slane %v1704, %v1723
        %v1726 = vmul.f32 %v1719, %v1724
        %v1728 = vlaneseq
        %v1729 = vshrl.u32 %v1728, 7
        %v1730 = vsub.s32 0, %v1729
        %v1731 = vrot.slane %v1706, %v1730
        %v1733 = vadd.f32 %v1726, %v1731
        %v1734 = vpack.c.bf16 %v1733, %v1733
        %s1735 = scalar_lea.vmem %s11, 16
        %v1736 = vld [vmem:[%s1735] sm:$0xf]
        %v1737 = vld [vmem:[%s1735 + $0x4] sm:$0xf]
        %v1738 = vld [vmem:[%s1735 + $0x8] sm:$0xf]
        %v1739 = vld [vmem:[%s1735 + $0xc] sm:$0xf]
        %s1740 = scalar_lea.vmem %s12, 1
        %v1741 = vld [vmem:[%s1740] sm:$0x1]
        %v1743 = vlaneseq
        %v1744 = vshrl.u32 %v1743, 7
        %v1745 = vsub.s32 0, %v1744
        %v1746 = vrot.slane %v1741, %v1745
        %v1752 = vunpack.c.l.b16 %v1736
        %v1753 = vunpack.c.l.b16 %v1737
        %v1754 = vunpack.c.l.b16 %v1738
        %v1755 = vunpack.c.l.b16 %v1739
        %v1756 = vpack.c.b16 %v1753, %v1752
        %v1757 = vpack.c.b16 %v1755, %v1754
        %v1761 = vsel %vm781, %v1734, 0
        %1763 = vmatprep.subr.bf16.mxu0 0
        %1764 = vmatpush1.bf16.msra.mxu0 0
        %1765 = vmatprep.subr.bf16.mxu0 0
        %1766 = vmatpush1.bf16.msra.mxu0 0
        %1767 = vmatprep.subr.bf16.mxu0 0
        %1768 = vmatpush1.bf16.msra.mxu0 0
        %1769 = vmatprep.subr.bf16.mxu0 0
        %1770 = vmatpush1.bf16.msra.mxu0 0
        %1771 = vmatprep.subr.bf16.mxu0 0
        %1772 = vmatpush1.bf16.msra.mxu0 0
        %1773 = vmatprep.subr.bf16.mxu0 0
        %1774 = vmatpush1.bf16.msra.mxu0 0
        %1775 = vmatprep.subr.bf16.mxu0 0
        %1776 = vmatpush1.bf16.msra.mxu0 %v1757
        %1777 = vmatprep.subr.bf16.mxu0 0
        %1778 = vmatpush1.bf16.msra.mxu0 %v1756
        %1779 = vmatprep.subr.bf16.mxu0 0
        %1780 = vmatpush2.bf16.msra.mxu0 0
        %1781 = vmatprep.subr.bf16.mxu0 0
        %1782 = vmatpush2.bf16.msra.mxu0 0
        %1783 = vmatprep.subr.bf16.mxu0 0
        %1784 = vmatpush2.bf16.msra.mxu0 0
        %1785 = vmatprep.subr.bf16.mxu0 0
        %1786 = vmatpush2.bf16.msra.mxu0 0
        %1787 = vmatprep.subr.bf16.mxu0 0
        %1788 = vmatpush2.bf16.msra.mxu0 0
        %1789 = vmatprep.subr.bf16.mxu0 0
        %1790 = vmatpush2.bf16.msra.mxu0 0
        %1791 = vmatprep.subr.bf16.mxu0 0
        %1792 = vmatpush2.bf16.msra.mxu0 0
        %1793 = vmatprep.subr.bf16.mxu0 0
        %1794 = vmatpush2.bf16.msra.mxu0 0
        %1795 = vmatprep.mubr.bf16.mxu0 0
        %1796 = vmatmul.mubr.bf16.gmra.mxu0 %v1761
        %v1797 = vpop.f32.mrf.mxu0
        %v1798 = vadd.f32 %v1746, %v1797
        %v1799 = vpop.f32.mrf.mxu0
        %v1800 = vpop.f32.mrf.mxu0
        %v1801 = vpop.f32.mrf.mxu0
        %1802 = vdwg.mxu0
        %v1803 = vmul.f32 %v1798, %v1798
        %v1804 = vmul.f32 %v1798, %v1803
        %v1805 = vmul.f32 %v1804, 0.044715
        %v1806 = vadd.f32 %v1798, %v1805
        %v1807 = vmul.f32 %v1806, 0.7978846
        %v1808 = vtanh.pop %v1807
        %v1809 = vadd.f32 %v1808, 1.0
        %v1810 = vmul.f32 %v1809, 0.5
        %v1811 = vmul.f32 %v1798, %v1810
        %v1812 = vpack.c.bf16 %v1811, %v1811
        %s1813 = scalar_lea.vmem %s13, 64
        %v1814 = vld [vmem:[%s1813] sm:$0xf]
        %v1815 = vld [vmem:[%s1813 + $0x4] sm:$0xf]
        %v1816 = vld [vmem:[%s1813 + $0x8] sm:$0xf]
        %v1817 = vld [vmem:[%s1813 + $0xc] sm:$0xf]
        %v1818 = vld [vmem:[%s1813 + $0x10] sm:$0xf]
        %v1819 = vld [vmem:[%s1813 + $0x14] sm:$0xf]
        %v1820 = vld [vmem:[%s1813 + $0x18] sm:$0xf]
        %v1821 = vld [vmem:[%s1813 + $0x1c] sm:$0xf]
        %v1822 = vld [vmem:[%s1813 + $0x20] sm:$0xf]
        %v1823 = vld [vmem:[%s1813 + $0x24] sm:$0xf]
        %v1824 = vld [vmem:[%s1813 + $0x28] sm:$0xf]
        %v1825 = vld [vmem:[%s1813 + $0x2c] sm:$0xf]
        %v1826 = vld [vmem:[%s1813 + $0x30] sm:$0xf]
        %v1827 = vld [vmem:[%s1813 + $0x34] sm:$0xf]
        %v1828 = vld [vmem:[%s1813 + $0x38] sm:$0xf]
        %v1829 = vld [vmem:[%s1813 + $0x3c] sm:$0xf]
        %s1830 = scalar_lea.vmem %s14, 1
        %v1831 = vld [vmem:[%s1830] sm:$0x1]
        %v1833 = vlaneseq
        %v1834 = vshrl.u32 %v1833, 7
        %v1835 = vsub.s32 0, %v1834
        %v1836 = vrot.slane %v1831, %v1835
        %v1854 = vunpack.c.l.b16 %v1814
        %v1855 = vunpack.c.l.b16 %v1815
        %v1856 = vunpack.c.l.b16 %v1816
        %v1857 = vunpack.c.l.b16 %v1817
        %v1858 = vunpack.c.l.b16 %v1818
        %v1859 = vunpack.c.l.b16 %v1819
        %v1860 = vunpack.c.l.b16 %v1820
        %v1861 = vunpack.c.l.b16 %v1821
        %v1862 = vunpack.c.l.b16 %v1822
        %v1863 = vunpack.c.l.b16 %v1823
        %v1864 = vunpack.c.l.b16 %v1824
        %v1865 = vunpack.c.l.b16 %v1825
        %v1866 = vunpack.c.l.b16 %v1826
        %v1867 = vunpack.c.l.b16 %v1827
        %v1868 = vunpack.c.l.b16 %v1828
        %v1869 = vunpack.c.l.b16 %v1829
        %v1870 = vpack.c.b16 %v1855, %v1854
        %v1871 = vpack.c.b16 %v1857, %v1856
        %v1872 = vpack.c.b16 %v1859, %v1858
        %v1873 = vpack.c.b16 %v1861, %v1860
        %v1874 = vpack.c.b16 %v1863, %v1862
        %v1875 = vpack.c.b16 %v1865, %v1864
        %v1876 = vpack.c.b16 %v1867, %v1866
        %v1877 = vpack.c.b16 %v1869, %v1868
        %1886 = vmatprep.subr.bf16.mxu0 0
        %1887 = vmatpush1.bf16.msra.mxu0 %v1877
        %1888 = vmatprep.subr.bf16.mxu0 0
        %1889 = vmatpush1.bf16.msra.mxu0 %v1876
        %1890 = vmatprep.subr.bf16.mxu0 0
        %1891 = vmatpush1.bf16.msra.mxu0 %v1875
        %1892 = vmatprep.subr.bf16.mxu0 0
        %1893 = vmatpush1.bf16.msra.mxu0 %v1874
        %1894 = vmatprep.subr.bf16.mxu0 0
        %1895 = vmatpush1.bf16.msra.mxu0 %v1873
        %1896 = vmatprep.subr.bf16.mxu0 0
        %1897 = vmatpush1.bf16.msra.mxu0 %v1872
        %1898 = vmatprep.subr.bf16.mxu0 0
        %1899 = vmatpush1.bf16.msra.mxu0 %v1871
        %1900 = vmatprep.subr.bf16.mxu0 0
        %1901 = vmatpush1.bf16.msra.mxu0 %v1870
        %1902 = vmatprep.subr.bf16.mxu0 0
        %1903 = vmatpush2.bf16.msra.mxu0 0
        %1904 = vmatprep.subr.bf16.mxu0 0
        %1905 = vmatpush2.bf16.msra.mxu0 0
        %1906 = vmatprep.subr.bf16.mxu0 0
        %1907 = vmatpush2.bf16.msra.mxu0 0
        %1908 = vmatprep.subr.bf16.mxu0 0
        %1909 = vmatpush2.bf16.msra.mxu0 0
        %1910 = vmatprep.subr.bf16.mxu0 0
        %1911 = vmatpush2.bf16.msra.mxu0 0
        %1912 = vmatprep.subr.bf16.mxu0 0
        %1913 = vmatpush2.bf16.msra.mxu0 0
        %1914 = vmatprep.subr.bf16.mxu0 0
        %1915 = vmatpush2.bf16.msra.mxu0 0
        %1916 = vmatprep.subr.bf16.mxu0 0
        %1917 = vmatpush2.bf16.msra.mxu0 0
        %1918 = vmatprep.mubr.bf16.mxu0 0
        %1919 = vmatmul.mubr.bf16.gmra.mxu0 %v1812
        %v1920 = vpop.f32.mrf.mxu0
        %v1921 = vadd.f32 %v1836, %v1920
        %v1922 = vpop.f32.mrf.mxu0
        %v1923 = vpop.f32.mrf.mxu0
        %v1924 = vpop.f32.mrf.mxu0
        %1925 = vdwg.mxu0
        %v1926 = vadd.f32 %v1733, %v1921
        %s1927 = scalar_lea.vmem %s15, 1
        %v1928 = vld [vmem:[%s1927] sm:$0x1]
        %s1929 = scalar_lea.vmem %s16, 1
        %v1930 = vld [vmem:[%s1929] sm:$0x1]
        %v1931 = vsel %vm781, %v1926, 0.0
        %1932 = vadd.xlane.f32.xlu0 %v1931
        %v1933 = vpop.xlane.xlu0 %1932
        %v1934 = vmul.f32 %v1933, %v785
        %v1935 = vsub.f32 %v1926, %v1934
        %v1936 = vmul.f32 %v1935, %v1935
        %v1937 = vsel %vm781, %v1936, 0.0
        %1938 = vadd.xlane.f32.xlu0 %v1937
        %v1939 = vpop.xlane.xlu0 %1938
        %v1940 = vmul.f32 %v1939, %v785
        %v1941 = vadd.f32 %v1940, 1e-12
        %v1942 = vrsqrt.pop %v1941
        %v1943 = vmul.f32 %v1935, %v1942
        %v1945 = vlaneseq
        %v1946 = vshrl.u32 %v1945, 7
        %v1947 = vsub.s32 0, %v1946
        %v1948 = vrot.slane %v1928, %v1947
        %v1950 = vmul.f32 %v1943, %v1948
        %v1952 = vlaneseq
        %v1953 = vshrl.u32 %v1952, 7
        %v1954 = vsub.s32 0, %v1953
        %v1955 = vrot.slane %v1930, %v1954
        %v1957 = vadd.f32 %v1950, %v1955
        %v1958 = vpack.c.bf16 %v1957, %v1957
        %v1959 = vld [vmem:[%s17] sm:$0xf]
        %v1960 = vld [vmem:[%s17 + $0x4] sm:$0xf]
        %v1961 = vld [vmem:[%s17 + $0x8] sm:$0xf]
        %v1962 = vld [vmem:[%s17 + $0xc] sm:$0xf]
        %v1963 = vld [vmem:[%s18] sm:$0x1]
        %v1965 = vlaneseq
        %v1966 = vshrl.u32 %v1965, 7
        %v1967 = vsub.s32 0, %v1966
        %v1968 = vrot.slane %v1963, %v1967
        %v1974 = vunpack.c.l.b16 %v1959
        %v1975 = vunpack.c.l.b16 %v1960
        %v1976 = vunpack.c.l.b16 %v1961
        %v1977 = vunpack.c.l.b16 %v1962
        %v1978 = vpack.c.b16 %v1975, %v1974
        %v1979 = vpack.c.b16 %v1977, %v1976
        %v1983 = vsel %vm781, %v1958, 0
        %1985 = vmatprep.subr.bf16.mxu0 0
        %1986 = vmatpush1.bf16.msra.mxu0 0
        %1987 = vmatprep.subr.bf16.mxu0 0
        %1988 = vmatpush1.bf16.msra.mxu0 0
        %1989 = vmatprep.subr.bf16.mxu0 0
        %1990 = vmatpush1.bf16.msra.mxu0 0
        %1991 = vmatprep.subr.bf16.mxu0 0
        %1992 = vmatpush1.bf16.msra.mxu0 0
        %1993 = vmatprep.subr.bf16.mxu0 0
        %1994 = vmatpush1.bf16.msra.mxu0 0
        %1995 = vmatprep.subr.bf16.mxu0 0
        %1996 = vmatpush1.bf16.msra.mxu0 0
        %1997 = vmatprep.subr.bf16.mxu0 0
        %1998 = vmatpush1.bf16.msra.mxu0 %v1979
        %1999 = vmatprep.subr.bf16.mxu0 0
        %2000 = vmatpush1.bf16.msra.mxu0 %v1978
        %2001 = vmatprep.subr.bf16.mxu0 0
        %2002 = vmatpush2.bf16.msra.mxu0 0
        %2003 = vmatprep.subr.bf16.mxu0 0
        %2004 = vmatpush2.bf16.msra.mxu0 0
        %2005 = vmatprep.subr.bf16.mxu0 0
        %2006 = vmatpush2.bf16.msra.mxu0 0
        %2007 = vmatprep.subr.bf16.mxu0 0
        %2008 = vmatpush2.bf16.msra.mxu0 0
        %2009 = vmatprep.subr.bf16.mxu0 0
        %2010 = vmatpush2.bf16.msra.mxu0 0
        %2011 = vmatprep.subr.bf16.mxu0 0
        %2012 = vmatpush2.bf16.msra.mxu0 0
        %2013 = vmatprep.subr.bf16.mxu0 0
        %2014 = vmatpush2.bf16.msra.mxu0 0
        %2015 = vmatprep.subr.bf16.mxu0 0
        %2016 = vmatpush2.bf16.msra.mxu0 0
        %2017 = vmatprep.mubr.bf16.mxu0 0
        %2018 = vmatmul.mubr.bf16.gmra.mxu0 %v1983
        %v2019 = vpop.f32.mrf.mxu0
        %v2020 = vadd.f32 %v1968, %v2019
        %v2021 = vpop.f32.mrf.mxu0
        %v2022 = vpop.f32.mrf.mxu0
        %v2023 = vpop.f32.mrf.mxu0
        %2024 = vdwg.mxu0
        %2025 = vst [vmem:[%s743] sm:$0xff] %v2020
        %v2026 = vld [vmem:[%s766] sm:$0xff]
        %v2027 = vld [vmem:[%s770] sm:$0xff]
        %vm2028 = vcmp.eq.s32.totalorder %v2027, 1
        %v2029 = vsel %vm2028, 1, 0
        %v2030 = vcvt.s32.f32 %v2029
        %2031 = vmax.xlane.f32.xlu0 %v2020
        %v2032 = vpop.xlane.xlu0 %2031
        %v2033 = vsub.f32 %v2020, %v2032
        %v2034 = vmul.f32 %v2033, 1.442695
        %v2035 = vpow.pop %v2034
        %2036 = vadd.xlane.f32.xlu0 %v2035
        %v2037 = vpop.xlane.xlu0 %2036
        %v2038 = vlog2.pop %v2037
        %v2039 = vmul.f32 %v2038, 0.6931472
        %v2040 = vadd.f32 %v2032, %v2039
        %v2041 = vlaneseq
        %v2042 = vand.u32 %v2041, 127
        %2043 = vset.pattern.permute.xlu0 0
        %2044 = vperm.xlu0 %2043, %v2026
        %v2045 = vpop.permute.xlu0 %2044
        %vm2046 = vcmp.eq.s32.totalorder %v2042, %v2045
        %v2047 = vsel %vm2046, %v2020, 0.0
        %2048 = vadd.xlane.f32.xlu0 %v2047
        %v2049 = vpop.xlane.xlu0 %2048
        %v2050 = vsub.f32 %v2040, %v2049
        %v2051 = vmul.f32 %v2050, %v2030
        %vm2052 = vcmask 7168
        %v2053 = vsel %vm2052, %v2051, 0.0
        %v2054 = vrot.slane %v2053, 4
        %v2055 = vadd.f32 %v2053, %v2054
        %v2056 = vrot.slane %v2055, 2
        %v2057 = vadd.f32 %v2055, %v2056
        %v2058 = vrot.slane %v2057, 1
        %v2059 = vadd.f32 %v2057, %v2058
        %vm2060 = vcmask 0
        %2061 = vst.msk [vmem:[%s773] sm:$0x1] %vm2060, %v2059
        %v2062 = vsel %vm2052, %v2030, 0.0
        %v2063 = vrot.slane %v2062, 4
        %v2064 = vadd.f32 %v2062, %v2063
        %v2065 = vrot.slane %v2064, 2
        %v2066 = vadd.f32 %v2064, %v2065
        %v2067 = vrot.slane %v2066, 1
        %v2068 = vadd.f32 %v2066, %v2067
        %2069 = vst.msk [vmem:[%s776] sm:$0x1] %vm2060, %v2068
        %s2070 = sand.u32 %s507, 1
        %s2071 = scalar_lea.sflag [#allocation3], %s2070
        %s2072 = sand.u32 %s507, 1
        %s2073 = smul.addr %s2072, 8
        %s2074 = scalar_lea.vmem [#allocation2], %s2073
        %p2075 = scmp.lt.s32.totalorder %s38, 1
        %s2076 = scalar_select %p2075, %s38, 1
        %s2077 = scalar_lea.vmem %s22, %s2076
        %p2078 = scmp.lt.s32.totalorder %s38, 1
        %s2079 = scalar_select %p2078, %s38, 1
        %s2080 = scalar_lea.vmem %s23, %s2079
        // Predicated region
        $region105: #{tpu_custom_call.1} parent=103 // pred_check
          %p2081 = pneg %p517
        $region106: #{tpu_custom_call.1} parent=103 // pred_check_branch
          %2083 = sbr.rel (%p2081) target = $region108
        $region107: #{tpu_custom_call.1} parent=103 // pred_region
          %s2085 = ssub.s32 128, 128
          %2086 = vsyncadd %s2071, %s2085
          %s2087 = smul.addr %s38, 128
          %s2088 = scalar_lea.hbm %s21, %s2087
          %s2090 = sshll.u32 %s2074, 4
          %s2091 = int_to_ptr.vmem [resolvable:$true] %s2090
          %2093 = dma.vmem_to_hbm [thread:$0]  %s2091, 128, %s2088, %s2071
        $region108: #{tpu_custom_call.1} parent=103 // pred_fallthru
          _
        // Predicated region
        $region109: #{tpu_custom_call.1} parent=103 // pred_check
          %p2094 = pneg %p543
        $region110: #{tpu_custom_call.1} parent=103 // pred_check_branch
          %2096 = sbr.rel (%p2094) target = $region112
        $region111: #{tpu_custom_call.1} parent=103 // pred_region
          _
        $region112: #{tpu_custom_call.1} parent=103 // pred_fallthru
          _
        // Predicated region
        $region113: #{tpu_custom_call.1} parent=103 // pred_check
          %p2097 = pneg %p569
        $region114: #{tpu_custom_call.1} parent=103 // pred_check_branch
          %2099 = sbr.rel (%p2097) target = $region116
        $region115: #{tpu_custom_call.1} parent=103 // pred_region
          _
        $region116: #{tpu_custom_call.1} parent=103 // pred_fallthru
          _
      $region104: #{tpu_custom_call.1} parent=5 // pred_fallthru
        _
      %p2100 = scmp.le.s32.totalorder 2, %s33
      // Predicated region
      $region117: #{tpu_custom_call.1} parent=5 // pred_check
        %p2101 = pneg %p2100
      $region118: #{tpu_custom_call.1} parent=5 // pred_check_branch
        %2103 = sbr.rel (%p2101) target = $region120
      $region119: #{tpu_custom_call.1} parent=5 // pred_region
        %s2104 = ssub.s32 %s33, 2
        // Predicated region
        $region121: #{tpu_custom_call.1} parent=119 // pred_check
          %p2105 = pneg %p523
        $region122: #{tpu_custom_call.1} parent=119 // pred_check_branch
          %2107 = sbr.rel (%p2105) target = $region124
        $region123: #{tpu_custom_call.1} parent=119 // pred_region
          %s2108 = sand.u32 %s508, 1
          %s2109 = scalar_lea.sflag [#allocation3], %s2108
          %s2110 = sand.u32 %s508, 1
          %s2111 = smul.addr %s2110, 8
          %s2112 = scalar_lea.vmem [#allocation2], %s2111
          %2113 = dma.done %s2109, 128
        $region124: #{tpu_custom_call.1} parent=119 // pred_fallthru
          _
        // Predicated region
        $region125: #{tpu_custom_call.1} parent=119 // pred_check
          %p2114 = pneg %p549
        $region126: #{tpu_custom_call.1} parent=119 // pred_check_branch
          %2116 = sbr.rel (%p2114) target = $region128
        $region127: #{tpu_custom_call.1} parent=119 // pred_region
          %p2117 = scmp.lt.s32.totalorder %s39, 1
          %s2118 = scalar_select %p2117, %s39, 1
          %s2119 = scalar_lea.vmem %s22, %s2118
        $region128: #{tpu_custom_call.1} parent=119 // pred_fallthru
          _
        // Predicated region
        $region129: #{tpu_custom_call.1} parent=119 // pred_check
          %p2120 = pneg %p575
        $region130: #{tpu_custom_call.1} parent=119 // pred_check_branch
          %2122 = sbr.rel (%p2120) target = $region132
        $region131: #{tpu_custom_call.1} parent=119 // pred_region
          %p2123 = scmp.lt.s32.totalorder %s39, 1
          %s2124 = scalar_select %p2123, %s39, 1
          %s2125 = scalar_lea.vmem %s23, %s2124
        $region132: #{tpu_custom_call.1} parent=119 // pred_fallthru
          _
      $region120: #{tpu_custom_call.1} parent=5 // pred_fallthru
        _
    $region6: #{tpu_custom_call.1} parent=1 // loop_footer
      %s37 = sadd.s32 1, %s33
    $region7: #{tpu_custom_call.1} parent=1 // loop_footer_branch
      %32 = sbr.rel target = $region3
    $region8: #{tpu_custom_call.1} parent=1 // loop_exit
      _
    %2126 = vsyncpa [#allocation3], 1
    %s2127 = scalar_lea.sflag [#allocation3], 1
    %2128 = vsyncpa %s2127, 1

</llo_original>
